<compile_context>
chip_gen: v5e
topology: v5e:2x2
jax: 0.10.0
libtpu: 0.0.40
codegen_flags: <defaults>
</compile_context>

<pallas_src>
import jax
import jax.numpy as jnp
from jax.experimental import pallas as pl
from jax.experimental.pallas import tpu as pltpu

HIDDEN = 128             # nn.LSTM(hidden_size=128)
G3 = 3 * HIDDEN          # pruned gate width per direction: [i, g, o]
G6 = 2 * G3              # both directions fused: 768
OUT_DIM = 2              # nn.Linear(256, 2)
OUT_PAD = 128            # lane-padded output width for the head matmul
TK_MAX = 4096            # K-tile ceiling (fused bf16 weight double-buffer
                         # ~12.6 MiB -> fits v5e/v6e/v7x VMEM budgets)


def _head(gates, wout):
    """gates: (B, 768) f32 fused pre-activations -> (B, OUT_PAD) head output.

    Computes h for each direction (PyTorch gate math with dead f-gate removed)
    and applies that direction's half of the Linear(256, 2) head, summing the
    two partials (equivalent to concat(h_f, h_b) @ W_out^T, no relayout).
    """
    def one_dir(g3, w_half):
        i_g = jax.nn.sigmoid(g3[:, 0 * HIDDEN:1 * HIDDEN])   # input gate
        g_g = jnp.tanh(g3[:, 1 * HIDDEN:2 * HIDDEN])         # cell candidate
        o_g = jax.nn.sigmoid(g3[:, 2 * HIDDEN:3 * HIDDEN])   # output gate
        h = o_g * jnp.tanh(i_g * g_g)                        # (B, 128)
        return jnp.dot(h, w_half, preferred_element_type=jnp.float32)

    return (one_dir(gates[:, :G3], wout[:HIDDEN, :]) +
            one_dir(gates[:, G3:], wout[HIDDEN:, :]))


def bilstm_kernel_single(x_ref, w_ref, b_ref, wout_ref, o_ref):
    """Single-step path (D <= TK_MAX): no scratch, no pl.when.

    x_ref:    (B, Dp)        bf16
    w_ref:    (Dp, 768)      bf16   fused [W_fwd | W_bwd] (pruned, transposed)
    b_ref:    (1, 768)       f32
    wout_ref: (256, OUT_PAD) f32    zero-padded head weight
    o_ref:    (B, OUT_PAD)   f32
    """
    g = jnp.dot(x_ref[...], w_ref[...],
                preferred_element_type=jnp.float32) + b_ref[...]
    o_ref[...] = _head(g, wout_ref[...])


def bilstm_kernel_tiled(x_ref, w_ref, b_ref, wout_ref, o_ref, acc_ref):
    """K-tiled path (D > TK_MAX): grid=(n_k,), f32 VMEM accumulator.

    x_ref:    (B, TK)        bf16   K-slice of the flattened input
    w_ref:    (TK, 768)      bf16   K-slice of the fused weight
    b_ref:    (1, 768)       f32
    wout_ref: (256, OUT_PAD) f32
    o_ref:    (B, OUT_PAD)   f32
    acc_ref:  (B, 768)       f32    persists across k (bias folded into init)
    """
    k = pl.program_id(0)

    @pl.when(k == 0)
    def _():
        acc_ref[...] = pl.broadcast_to(b_ref[...], acc_ref.shape)

    acc_ref[...] += jnp.dot(x_ref[...], w_ref[...],
                            preferred_element_type=jnp.float32)

    @pl.when(k == pl.num_programs(0) - 1)
    def _():
        o_ref[...] = _head(acc_ref[...], wout_ref[...])


def init_params(key, input_size):
    """Deterministic init mimicking the PyTorch module's parameter shapes."""
    ks = jax.random.split(key, 8)
    lstm_bound = 1.0 / jnp.sqrt(jnp.float32(HIDDEN))
    lin_bound = 1.0 / jnp.sqrt(jnp.float32(2 * HIDDEN))

    def u(k, shape, bound):
        return jax.random.uniform(k, shape, jnp.float32, -bound, bound)

    return {
        # forward direction
        "w_ih_f": u(ks[0], (4 * HIDDEN, input_size), lstm_bound),
        "b_ih_f": u(ks[1], (4 * HIDDEN,), lstm_bound),
        "b_hh_f": u(ks[2], (4 * HIDDEN,), lstm_bound),
        # backward direction ("_reverse" params in PyTorch)
        "w_ih_b": u(ks[3], (4 * HIDDEN, input_size), lstm_bound),
        "b_ih_b": u(ks[4], (4 * HIDDEN,), lstm_bound),
        "b_hh_b": u(ks[5], (4 * HIDDEN,), lstm_bound),
        # weight_hh_l0 / _reverse multiply h0 == 0 -> intentionally omitted.
        # output head
        "w_out": u(ks[6], (OUT_DIM, 2 * HIDDEN), lin_bound),
        "b_out": u(ks[7], (OUT_DIM,), lin_bound),
    }


def _tiling(d):
    """Adaptive K-tiling: (n_k, tk) with tk a lane multiple, tk <= TK_MAX."""
    n_k = max(1, (d + TK_MAX - 1) // TK_MAX)
    per = (d + n_k - 1) // n_k
    tk = ((per + 127) // 128) * 128
    return n_k, tk


def prepare_params(params):
    """One-time parameter massaging (keep OFF the per-call hot path).

    - prune forget-gate rows from W_ih / biases (c0 == 0 makes them dead)
    - transpose to (D, 3H) and FUSE both directions along the gate axis
    - zero-pad D to n_k * tk and reshape to (n_k, tk, 768) bf16 (tiling is
      encoded in the array shape so the jitted wrapper needs no extra statics)
    - zero-pad the Linear(256, 2) weight to a lane-dense (256, 128) block
    """
    def prune_w(w4h_d):                       # (4H, D) -> (3H, D): keep i, g, o
        return jnp.concatenate([w4h_d[:HIDDEN], w4h_d[2 * HIDDEN:]], axis=0)

    def prune_b(b_ih, b_hh):                  # (4H,) -> (3H,)
        b = b_ih + b_hh
        return jnp.concatenate([b[:HIDDEN], b[2 * HIDDEN:]], axis=0)

    w_f = prune_w(params["w_ih_f"]).T         # (D, 384)
    w_b = prune_w(params["w_ih_b"]).T         # (D, 384)
    D = w_f.shape[0]
    n_k, tk = _tiling(D)
    d_pad = n_k * tk

    w = jnp.concatenate([w_f, w_b], axis=1)   # (D, 768) fused directions
    if d_pad != D:                            # zero rows: semantically neutral
        w = jnp.pad(w, ((0, d_pad - D), (0, 0)))
    w = w.reshape(n_k, tk, G6).astype(jnp.bfloat16)

    b = jnp.concatenate([prune_b(params["b_ih_f"], params["b_hh_f"]),
                         prune_b(params["b_ih_b"], params["b_hh_b"])],
                        axis=0).reshape(1, G6).astype(jnp.float32)

    wout = jnp.zeros((2 * HIDDEN, OUT_PAD), jnp.float32)
    wout = wout.at[:, :OUT_DIM].set(params["w_out"].T)        # (256, 128)

    return {"w": w, "b": b, "wout": wout,
            "b_out": params["b_out"].astype(jnp.float32)}


def _bilstm_net_impl(x, prepared):
    B = x.shape[0]
    x2d = x.reshape(B, -1).astype(jnp.bfloat16)       # x.view(len(x), 1, -1)
    w = prepared["w"]
    n_k, tk, _ = w.shape                              # static under jit
    d_pad = n_k * tk
    D = x2d.shape[1]
    if d_pad != D:
        x2d = jnp.pad(x2d, ((0, 0), (0, d_pad - D)))

    compiler_params = pltpu.CompilerParams(
        dimension_semantics=("arbitrary",),
        vmem_limit_bytes=32 * 1024 * 1024,
    )

    if n_k == 1:
        # Small-D fast path: single grid step, no accumulator, no pl.when.
        partial = pl.pallas_call(
            bilstm_kernel_single,
            out_shape=jax.ShapeDtypeStruct((B, OUT_PAD), jnp.float32),
            grid_spec=pltpu.PrefetchScalarGridSpec(
                num_scalar_prefetch=0,
                grid=(1,),
                in_specs=[
                    pl.BlockSpec((B, tk), lambda k: (0, 0)),               # x
                    pl.BlockSpec((None, tk, G6), lambda k: (0, 0, 0)),     # W
                    pl.BlockSpec((1, G6), lambda k: (0, 0)),               # bias
                    pl.BlockSpec((2 * HIDDEN, OUT_PAD), lambda k: (0, 0)), # head
                ],
                out_specs=pl.BlockSpec((B, OUT_PAD), lambda k: (0, 0)),
            ),
            compiler_params=compiler_params,
        )(x2d, w, prepared["b"], prepared["wout"])
    else:
        # Large-D path: stream the fused weight in K-tiles, accumulate in VMEM.
        partial = pl.pallas_call(
            bilstm_kernel_tiled,
            out_shape=jax.ShapeDtypeStruct((B, OUT_PAD), jnp.float32),
            grid_spec=pltpu.PrefetchScalarGridSpec(
                num_scalar_prefetch=0,
                grid=(n_k,),
                in_specs=[
                    pl.BlockSpec((B, tk), lambda k: (0, k)),               # x
                    pl.BlockSpec((None, tk, G6), lambda k: (k, 0, 0)),     # W
                    pl.BlockSpec((1, G6), lambda k: (0, 0)),               # bias
                    pl.BlockSpec((2 * HIDDEN, OUT_PAD), lambda k: (0, 0)), # head
                ],
                out_specs=pl.BlockSpec((B, OUT_PAD), lambda k: (0, 0)),
                scratch_shapes=[pltpu.VMEM((B, G6), jnp.float32)],
            ),
            compiler_params=compiler_params,
        )(x2d, w, prepared["b"], prepared["wout"])

    # Drop the lane padding, add the head bias.
    return partial[:, :OUT_DIM] + prepared["b_out"]            # (B, 2)


bilstm_net = jax.jit(_bilstm_net_impl)


def bilstm_net_ref(x, params):
    """Pure-JAX f32 reference of the same math (for correctness check)."""
    B = x.shape[0]
    x2d = x.reshape(B, -1).astype(jnp.float32)

    def step(w_ih, b_ih, b_hh):
        g = x2d @ w_ih.T + b_ih + b_hh
        i_g = jax.nn.sigmoid(g[:, 0 * HIDDEN:1 * HIDDEN])
        g_g = jnp.tanh(g[:, 2 * HIDDEN:3 * HIDDEN])
        o_g = jax.nn.sigmoid(g[:, 3 * HIDDEN:4 * HIDDEN])
        return o_g * jnp.tanh(i_g * g_g)

    h = jnp.concatenate(
        [step(params["w_ih_f"], params["b_ih_f"], params["b_hh_f"]),
         step(params["w_ih_b"], params["b_ih_b"], params["b_hh_b"])], axis=-1)
    return h @ params["w_out"].T + params["b_out"]


if __name__ == "__main__":
    key = jax.random.PRNGKey(0)
    k_x1, k_p1, k_x2, k_p2 = jax.random.split(key, 4)

    # --- Test 1: small NCHW input (single-step kernel path), D = 1024 -------
    x1 = jax.random.normal(k_x1, (8, 4, 16, 16), dtype=jnp.float32)
    params1 = init_params(k_p1, 4 * 16 * 16)
    prepared1 = prepare_params(params1)      # one-time weight prep
    out1 = jax.block_until_ready(bilstm_net(x1, prepared1))
    ref1 = bilstm_net_ref(x1, params1)
    assert out1.shape == (8, OUT_DIM)
    # bf16 weight/activation stream (f32 accumulation) -> loosened tolerance.
    assert jnp.allclose(out1, ref1, atol=3e-2, rtol=3e-2), "mismatch (single)"

    # --- Test 2: larger input (K-tiled kernel path), D = 4608 > TK_MAX ------
    x2 = jax.random.normal(k_x2, (8, 4, 36, 32), dtype=jnp.float32)
    params2 = init_params(k_p2, 4 * 36 * 32)
    prepared2 = prepare_params(params2)
    out2 = jax.block_until_ready(bilstm_net(x2, prepared2))
    ref2 = bilstm_net_ref(x2, params2)
    assert out2.shape == (8, OUT_DIM)
    assert jnp.allclose(out2, ref2, atol=5e-2, rtol=5e-2), "mismatch (tiled)"

    print("KERNEL_OK")
</pallas_src>

<mosaic_0001>
module attributes {stable_mosaic.version = 11 : i64} {
  func.func @bilstm_kernel_single(%arg0: i32, %arg1: memref<8x1024xbf16, #tpu.memory_space<vmem>>, %arg2: memref<1x1024x768xbf16, #tpu.memory_space<vmem>>, %arg3: memref<1x768xf32, #tpu.memory_space<vmem>>, %arg4: memref<256x128xf32, #tpu.memory_space<vmem>>, %arg5: memref<8x128xf32, #tpu.memory_space<vmem>>) attributes {dimension_semantics = [#tpu.dimension_semantics<arbitrary>], iteration_bounds = array<i64: 1>, scalar_prefetch = 0 : i64, scratch_operands = 0 : i64, tpu.core_type = #tpu.core_type<tc>, window_params = [{pipeline_mode = #tpu.pipeline_mode<synchronous>, transform_indices = @transform_0, window_bounds = array<i64: 8, 1024>}, {pipeline_mode = #tpu.pipeline_mode<synchronous>, transform_indices = @transform_1, window_bounds = array<i64: 1, 1024, 768>}, {pipeline_mode = #tpu.pipeline_mode<synchronous>, transform_indices = @transform_2, window_bounds = array<i64: 1, 768>}, {pipeline_mode = #tpu.pipeline_mode<synchronous>, transform_indices = @transform_3, window_bounds = array<i64: 256, 128>}, {pipeline_mode = #tpu.pipeline_mode<synchronous>, transform_indices = @transform_4, window_bounds = array<i64: 8, 128>}]} {
    %c0 = arith.constant 0 : index
    %c0_0 = arith.constant 0 : index
    %0 = vector.load %arg1[%c0, %c0_0] : memref<8x1024xbf16, #tpu.memory_space<vmem>>, vector<8x1024xbf16>
    %c0_1 = arith.constant 0 : index
    %c0_2 = arith.constant 0 : index
    %c0_3 = arith.constant 0 : index
    %1 = vector.load %arg2[%c0_1, %c0_2, %c0_3] : memref<1x1024x768xbf16, #tpu.memory_space<vmem>>, vector<1x1024x768xbf16>
    %2 = vector.shape_cast %1 : vector<1x1024x768xbf16> to vector<1024x768xbf16>
    %cst = arith.constant dense<0.000000e+00> : vector<8x768xf32>
    %3 = tpu.matmul %0, %2, %cst {dimension_numbers = #tpu.dot_dimension_numbers<[1], [0], [0], [1], [0, 0, 1, 1], [], []>} : vector<8x1024xbf16>, vector<1024x768xbf16>, vector<8x768xf32> -> vector<8x768xf32>
    %c0_4 = arith.constant 0 : index
    %c0_5 = arith.constant 0 : index
    %4 = vector.load %arg3[%c0_4, %c0_5] : memref<1x768xf32, #tpu.memory_space<vmem>>, vector<1x768xf32>
    %5 = vector.broadcast %4 : vector<1x768xf32> to vector<8x768xf32>
    %6 = arith.addf %3, %5 : vector<8x768xf32>
    %c0_6 = arith.constant 0 : index
    %c0_7 = arith.constant 0 : index
    %7 = vector.load %arg4[%c0_6, %c0_7] : memref<256x128xf32, #tpu.memory_space<vmem>>, vector<256x128xf32>
    %8 = vector.extract_strided_slice %6 {offsets = [0, 0], sizes = [8, 384], strides = [1, 1]} : vector<8x768xf32> to vector<8x384xf32>
    %9 = vector.extract_strided_slice %7 {offsets = [0, 0], sizes = [128, 128], strides = [1, 1]} : vector<256x128xf32> to vector<128x128xf32>
    %10 = vector.extract_strided_slice %8 {offsets = [0, 0], sizes = [8, 128], strides = [1, 1]} : vector<8x384xf32> to vector<8x128xf32>
    %11 = arith.negf %10 : vector<8x128xf32>
    %12 = math.exp %11 : vector<8x128xf32>
    %cst_8 = arith.constant 1.000000e+00 : f32
    %13 = vector.broadcast %cst_8 : f32 to vector<8x128xf32>
    %14 = arith.addf %13, %12 : vector<8x128xf32>
    %15 = arith.divf %13, %14 : vector<8x128xf32>
    %16 = vector.extract_strided_slice %8 {offsets = [0, 128], sizes = [8, 128], strides = [1, 1]} : vector<8x384xf32> to vector<8x128xf32>
    %17 = math.tanh %16 : vector<8x128xf32>
    %18 = vector.extract_strided_slice %8 {offsets = [0, 256], sizes = [8, 128], strides = [1, 1]} : vector<8x384xf32> to vector<8x128xf32>
    %19 = arith.negf %18 : vector<8x128xf32>
    %20 = math.exp %19 : vector<8x128xf32>
    %cst_9 = arith.constant 1.000000e+00 : f32
    %21 = vector.broadcast %cst_9 : f32 to vector<8x128xf32>
    %22 = arith.addf %21, %20 : vector<8x128xf32>
    %23 = arith.divf %21, %22 : vector<8x128xf32>
    %24 = arith.mulf %15, %17 : vector<8x128xf32>
    %25 = math.tanh %24 : vector<8x128xf32>
    %26 = arith.mulf %23, %25 : vector<8x128xf32>
    %cst_10 = arith.constant dense<0.000000e+00> : vector<8x128xf32>
    %27 = tpu.matmul %26, %9, %cst_10 {dimension_numbers = #tpu.dot_dimension_numbers<[1], [0], [0], [1], [0, 0, 1, 1], [], []>} : vector<8x128xf32>, vector<128x128xf32>, vector<8x128xf32> -> vector<8x128xf32>
    %28 = vector.extract_strided_slice %6 {offsets = [0, 384], sizes = [8, 384], strides = [1, 1]} : vector<8x768xf32> to vector<8x384xf32>
    %29 = vector.extract_strided_slice %7 {offsets = [128, 0], sizes = [128, 128], strides = [1, 1]} : vector<256x128xf32> to vector<128x128xf32>
    %30 = vector.extract_strided_slice %28 {offsets = [0, 0], sizes = [8, 128], strides = [1, 1]} : vector<8x384xf32> to vector<8x128xf32>
    %31 = arith.negf %30 : vector<8x128xf32>
    %32 = math.exp %31 : vector<8x128xf32>
    %cst_11 = arith.constant 1.000000e+00 : f32
    %33 = vector.broadcast %cst_11 : f32 to vector<8x128xf32>
    %34 = arith.addf %33, %32 : vector<8x128xf32>
    %35 = arith.divf %33, %34 : vector<8x128xf32>
    %36 = vector.extract_strided_slice %28 {offsets = [0, 128], sizes = [8, 128], strides = [1, 1]} : vector<8x384xf32> to vector<8x128xf32>
    %37 = math.tanh %36 : vector<8x128xf32>
    %38 = vector.extract_strided_slice %28 {offsets = [0, 256], sizes = [8, 128], strides = [1, 1]} : vector<8x384xf32> to vector<8x128xf32>
    %39 = arith.negf %38 : vector<8x128xf32>
    %40 = math.exp %39 : vector<8x128xf32>
    %cst_12 = arith.constant 1.000000e+00 : f32
    %41 = vector.broadcast %cst_12 : f32 to vector<8x128xf32>
    %42 = arith.addf %41, %40 : vector<8x128xf32>
    %43 = arith.divf %41, %42 : vector<8x128xf32>
    %44 = arith.mulf %35, %37 : vector<8x128xf32>
    %45 = math.tanh %44 : vector<8x128xf32>
    %46 = arith.mulf %43, %45 : vector<8x128xf32>
    %cst_13 = arith.constant dense<0.000000e+00> : vector<8x128xf32>
    %47 = tpu.matmul %46, %29, %cst_13 {dimension_numbers = #tpu.dot_dimension_numbers<[1], [0], [0], [1], [0, 0, 1, 1], [], []>} : vector<8x128xf32>, vector<128x128xf32>, vector<8x128xf32> -> vector<8x128xf32>
    %48 = arith.addf %27, %47 : vector<8x128xf32>
    %c0_14 = arith.constant 0 : index
    %c0_15 = arith.constant 0 : index
    %49 = vector.load %arg5[%c0_14, %c0_15] : memref<8x128xf32, #tpu.memory_space<vmem>>, vector<8x128xf32>
    tpu.vector_store %arg5[%c0_14, %c0_15], %48 {strides = array<i32>} : memref<8x128xf32, #tpu.memory_space<vmem>>, vector<8x128xf32>,
    return
  }
  func.func @transform_0(%arg0: i32) -> (i32, i32) {
    %c0_i32 = arith.constant 0 : i32
    %c0_i32_0 = arith.constant 0 : i32
    %c0_i32_1 = arith.constant 0 : i32
    return %c0_i32, %c0_i32_0 : i32, i32
  }
  func.func @transform_1(%arg0: i32) -> (i32, i32, i32) {
    %c0_i32 = arith.constant 0 : i32
    %c0_i32_0 = arith.constant 0 : i32
    %c0_i32_1 = arith.constant 0 : i32
    %c0_i32_2 = arith.constant 0 : i32
    return %c0_i32, %c0_i32_0, %c0_i32_1 : i32, i32, i32
  }
  func.func @transform_2(%arg0: i32) -> (i32, i32) {
    %c0_i32 = arith.constant 0 : i32
    %c0_i32_0 = arith.constant 0 : i32
    %c0_i32_1 = arith.constant 0 : i32
    return %c0_i32, %c0_i32_0 : i32, i32
  }
  func.func @transform_3(%arg0: i32) -> (i32, i32) {
    %c0_i32 = arith.constant 0 : i32
    %c0_i32_0 = arith.constant 0 : i32
    %c0_i32_1 = arith.constant 0 : i32
    return %c0_i32, %c0_i32_0 : i32, i32
  }
  func.func @transform_4(%arg0: i32) -> (i32, i32) {
    %c0_i32 = arith.constant 0 : i32
    %c0_i32_0 = arith.constant 0 : i32
    %c0_i32_1 = arith.constant 0 : i32
    return %c0_i32, %c0_i32_0 : i32, i32
  }
}

</mosaic_0001>

<llo_original>
// kernel: _bilstm_net_impl.1
$region0: #{_bilstm_net_impl.1}
  #allocation0 [shape = 'u32[]', space=smem, size = 0x4, offset = 0x4, fixed_abs, tag = 'smem constant byte address 0x4 - core index']
  #allocation1 [shape = 'u32[72,128]{1,0:T(1,128)}', space=vmem, size = 0x9000, scoped, tag = 'internal scratch']
  %s0 = inlined_call_operand.vmem [shape: bf16[8,1024], index: 0, kind: input, shape index: {}]
  %s1 = inlined_call_operand.hbm [shape: bf16[1,1024,768], index: 1, kind: input, shape index: {}]
  %s2 = inlined_call_operand.hbm [shape: f32[1,768], index: 2, kind: input, shape index: {}]
  %s3 = inlined_call_operand.hbm [shape: f32[256,128], index: 3, kind: input, shape index: {}]
  %s4 = inlined_call_operand.vmem [shape: f32[8,128], index: 4, kind: output, shape index: {}]
  %s5 = sld [smem:[#allocation0]]
  $region38: #{_bilstm_net_impl.1} parent=0
    _
  %s7 = ssub.s32 1, %s5
  %s8 = scalar_select 0, %s7, %s5
  $region1: #{_bilstm_net_impl.1} parent=0
    #allocation2 [shape = 'u8[1572864]{0}', space=vmem, size = 0x180000, scoped, tag = 'input window, operand 1, single buffered']
    #allocation3 [shape = 's32[1]{0}', space=sflag, size = 0x4, scoped, tag = 'scoped memory for _bilstm_net_impl.1']
    #allocation4 [shape = 'u8[3072]{0}', space=vmem, size = 0xc00, scoped, tag = 'input window, operand 2, single buffered']
    #allocation5 [shape = 's32[1]{0}', space=sflag, size = 0x4, scoped, tag = 'scoped memory for _bilstm_net_impl.1']
    #allocation6 [shape = 'u8[131072]{0}', space=vmem, size = 0x20000, scoped, tag = 'input window, operand 3, single buffered']
    %9 = vsyncpa [#allocation3], 0
    %10 = vsyncpa [#allocation5], 0
    // Predicated region
    $region2: #{_bilstm_net_impl.1} parent=1 // pred_check
      _
    $region3: #{_bilstm_net_impl.1} parent=1 // pred_check_branch
      %12 = sbr.rel (0) target = $region5
    $region4: #{_bilstm_net_impl.1} parent=1 // pred_region
      _
    $region5: #{_bilstm_net_impl.1} parent=1 // pred_fallthru
      _
    // Predicated region
    $region6: #{_bilstm_net_impl.1} parent=1 // pred_check
      _
    $region7: #{_bilstm_net_impl.1} parent=1 // pred_check_branch
      %14 = sbr.rel (0) target = $region9
    $region8: #{_bilstm_net_impl.1} parent=1 // pred_region
      %16 = vsyncadd [#allocation3], 0
      %s17 = sshll.u32 %s1, 4
      %s18 = int_to_ptr.hbm [resolvable:$true] %s17
      %s19 = sshll.u32 [#allocation2], 4
      %s20 = int_to_ptr.vmem [resolvable:$true] %s19
      %25 = dma.hbm_to_vmem [thread:$0]  %s18, 49152, %s20, [#allocation3], 384, 384, 24
    $region9: #{_bilstm_net_impl.1} parent=1 // pred_fallthru
      _
    // Predicated region
    $region10: #{_bilstm_net_impl.1} parent=1 // pred_check
      _
    $region11: #{_bilstm_net_impl.1} parent=1 // pred_check_branch
      %27 = sbr.rel (0) target = $region13
    $region12: #{_bilstm_net_impl.1} parent=1 // pred_region
      %29 = vsyncadd [#allocation5], 0
      %s31 = sshll.u32 %s2, 4
      %s32 = int_to_ptr.hbm [resolvable:$true] %s31
      %s33 = sshll.u32 [#allocation4], 4
      %s34 = int_to_ptr.vmem [resolvable:$true] %s33
      %36 = dma.hbm_to_vmem [thread:$0]  %s32, 96, %s34, [#allocation5]
    $region13: #{_bilstm_net_impl.1} parent=1 // pred_fallthru
      _
    // Predicated region
    $region14: #{_bilstm_net_impl.1} parent=1 // pred_check
      _
    $region15: #{_bilstm_net_impl.1} parent=1 // pred_check_branch
      %38 = sbr.rel (0) target = $region17
    $region16: #{_bilstm_net_impl.1} parent=1 // pred_region
      %40 = vsyncadd [#allocation5], 0
      %s41 = sshll.u32 %s3, 4
      %s42 = int_to_ptr.hbm [resolvable:$true] %s41
      %s43 = sshll.u32 [#allocation6], 4
      %s44 = int_to_ptr.vmem [resolvable:$true] %s43
      %49 = dma.hbm_to_vmem [thread:$0]  %s42, 4096, %s44, [#allocation5], 128, 128, 8
    $region17: #{_bilstm_net_impl.1} parent=1 // pred_fallthru
      _
    // Predicated region
    $region18: #{_bilstm_net_impl.1} parent=1 // pred_check
      _
    $region19: #{_bilstm_net_impl.1} parent=1 // pred_check_branch
      %51 = sbr.rel (0) target = $region21
    $region20: #{_bilstm_net_impl.1} parent=1 // pred_region
      %53 = dma.done [#allocation3], 49152
    $region21: #{_bilstm_net_impl.1} parent=1 // pred_fallthru
      _
    // Predicated region
    $region22: #{_bilstm_net_impl.1} parent=1 // pred_check
      _
    $region23: #{_bilstm_net_impl.1} parent=1 // pred_check_branch
      %55 = sbr.rel (0) target = $region25
    $region24: #{_bilstm_net_impl.1} parent=1 // pred_region
      %57 = dma.done [#allocation5], 96
    $region25: #{_bilstm_net_impl.1} parent=1 // pred_fallthru
      _
    // Predicated region
    $region26: #{_bilstm_net_impl.1} parent=1 // pred_check
      _
    $region27: #{_bilstm_net_impl.1} parent=1 // pred_check_branch
      %59 = sbr.rel (0) target = $region29
    $region28: #{_bilstm_net_impl.1} parent=1 // pred_region
      %61 = dma.done [#allocation5], 4096
    $region29: #{_bilstm_net_impl.1} parent=1 // pred_fallthru
      _
    %v62 = vld [vmem:[%s0] sm:$0xff]
    %v63 = vld [vmem:[%s0 + $0x8] sm:$0xff]
    %v64 = vld [vmem:[%s0 + $0x10] sm:$0xff]
    %v65 = vld [vmem:[%s0 + $0x18] sm:$0xff]
    %v66 = vld [vmem:[#allocation2] sm:$0xff]
    %v67 = vld [vmem:[#allocation2 + $0x8] sm:$0xff]
    %v68 = vld [vmem:[#allocation2 + $0x10] sm:$0xff]
    %v69 = vld [vmem:[#allocation2 + $0x18] sm:$0xff]
    %v70 = vld [vmem:[#allocation2 + $0x20] sm:$0xff]
    %v71 = vld [vmem:[#allocation2 + $0x28] sm:$0xff]
    %v72 = vld [vmem:[#allocation2 + $0x30] sm:$0xff]
    %v73 = vld [vmem:[#allocation2 + $0x38] sm:$0xff]
    %v74 = vld [vmem:[#allocation2 + $0x40] sm:$0xff]
    %v75 = vld [vmem:[#allocation2 + $0x48] sm:$0xff]
    %v76 = vld [vmem:[#allocation2 + $0x50] sm:$0xff]
    %v77 = vld [vmem:[#allocation2 + $0x58] sm:$0xff]
    %v78 = vld [vmem:[#allocation2 + $0x60] sm:$0xff]
    %v79 = vld [vmem:[#allocation2 + $0x68] sm:$0xff]
    %v80 = vld [vmem:[#allocation2 + $0x70] sm:$0xff]
    %v81 = vld [vmem:[#allocation2 + $0x78] sm:$0xff]
    %v82 = vld [vmem:[#allocation2 + $0x80] sm:$0xff]
    %v83 = vld [vmem:[#allocation2 + $0x88] sm:$0xff]
    %v84 = vld [vmem:[#allocation2 + $0x90] sm:$0xff]
    %v85 = vld [vmem:[#allocation2 + $0x98] sm:$0xff]
    %v86 = vld [vmem:[#allocation2 + $0xa0] sm:$0xff]
    %v87 = vld [vmem:[#allocation2 + $0xa8] sm:$0xff]
    %v88 = vld [vmem:[#allocation2 + $0xb0] sm:$0xff]
    %v89 = vld [vmem:[#allocation2 + $0xb8] sm:$0xff]
    %v90 = vld [vmem:[#allocation2 + $0xc0] sm:$0xff]
    %v91 = vld [vmem:[#allocation2 + $0xc8] sm:$0xff]
    %v92 = vld [vmem:[#allocation2 + $0xd0] sm:$0xff]
    %v93 = vld [vmem:[#allocation2 + $0xd8] sm:$0xff]
    %v94 = vld [vmem:[#allocation2 + $0xe0] sm:$0xff]
    %v95 = vld [vmem:[#allocation2 + $0xe8] sm:$0xff]
    %v96 = vld [vmem:[#allocation2 + $0xf0] sm:$0xff]
    %v97 = vld [vmem:[#allocation2 + $0xf8] sm:$0xff]
    %v98 = vld [vmem:[#allocation2 + $0x100] sm:$0xff]
    %v99 = vld [vmem:[#allocation2 + $0x108] sm:$0xff]
    %v100 = vld [vmem:[#allocation2 + $0x110] sm:$0xff]
    %v101 = vld [vmem:[#allocation2 + $0x118] sm:$0xff]
    %v102 = vld [vmem:[#allocation2 + $0x120] sm:$0xff]
    %v103 = vld [vmem:[#allocation2 + $0x128] sm:$0xff]
    %v104 = vld [vmem:[#allocation2 + $0x130] sm:$0xff]
    %v105 = vld [vmem:[#allocation2 + $0x138] sm:$0xff]
    %v106 = vld [vmem:[#allocation2 + $0x140] sm:$0xff]
    %v107 = vld [vmem:[#allocation2 + $0x148] sm:$0xff]
    %v108 = vld [vmem:[#allocation2 + $0x150] sm:$0xff]
    %v109 = vld [vmem:[#allocation2 + $0x158] sm:$0xff]
    %v110 = vld [vmem:[#allocation2 + $0x160] sm:$0xff]
    %v111 = vld [vmem:[#allocation2 + $0x168] sm:$0xff]
    %v112 = vld [vmem:[#allocation2 + $0x170] sm:$0xff]
    %v113 = vld [vmem:[#allocation2 + $0x178] sm:$0xff]
    %v114 = vld [vmem:[#allocation2 + $0x180] sm:$0xff]
    %v115 = vld [vmem:[#allocation2 + $0x188] sm:$0xff]
    %v116 = vld [vmem:[#allocation2 + $0x190] sm:$0xff]
    %v117 = vld [vmem:[#allocation2 + $0x198] sm:$0xff]
    %v118 = vld [vmem:[#allocation2 + $0x1a0] sm:$0xff]
    %v119 = vld [vmem:[#allocation2 + $0x1a8] sm:$0xff]
    %v120 = vld [vmem:[#allocation2 + $0x1b0] sm:$0xff]
    %v121 = vld [vmem:[#allocation2 + $0x1b8] sm:$0xff]
    %v122 = vld [vmem:[#allocation2 + $0x1c0] sm:$0xff]
    %v123 = vld [vmem:[#allocation2 + $0x1c8] sm:$0xff]
    %v124 = vld [vmem:[#allocation2 + $0x1d0] sm:$0xff]
    %v125 = vld [vmem:[#allocation2 + $0x1d8] sm:$0xff]
    %v126 = vld [vmem:[#allocation2 + $0x1e0] sm:$0xff]
    %v127 = vld [vmem:[#allocation2 + $0x1e8] sm:$0xff]
    %v128 = vld [vmem:[#allocation2 + $0x1f0] sm:$0xff]
    %v129 = vld [vmem:[#allocation2 + $0x1f8] sm:$0xff]
    %v130 = vld [vmem:[#allocation2 + $0x200] sm:$0xff]
    %v131 = vld [vmem:[#allocation2 + $0x208] sm:$0xff]
    %v132 = vld [vmem:[#allocation2 + $0x210] sm:$0xff]
    %v133 = vld [vmem:[#allocation2 + $0x218] sm:$0xff]
    %v134 = vld [vmem:[#allocation2 + $0x220] sm:$0xff]
    %v135 = vld [vmem:[#allocation2 + $0x228] sm:$0xff]
    %v136 = vld [vmem:[#allocation2 + $0x230] sm:$0xff]
    %v137 = vld [vmem:[#allocation2 + $0x238] sm:$0xff]
    %v138 = vld [vmem:[#allocation2 + $0x240] sm:$0xff]
    %v139 = vld [vmem:[#allocation2 + $0x248] sm:$0xff]
    %v140 = vld [vmem:[#allocation2 + $0x250] sm:$0xff]
    %v141 = vld [vmem:[#allocation2 + $0x258] sm:$0xff]
    %v142 = vld [vmem:[#allocation2 + $0x260] sm:$0xff]
    %v143 = vld [vmem:[#allocation2 + $0x268] sm:$0xff]
    %v144 = vld [vmem:[#allocation2 + $0x270] sm:$0xff]
    %v145 = vld [vmem:[#allocation2 + $0x278] sm:$0xff]
    %v146 = vld [vmem:[#allocation2 + $0x280] sm:$0xff]
    %v147 = vld [vmem:[#allocation2 + $0x288] sm:$0xff]
    %v148 = vld [vmem:[#allocation2 + $0x290] sm:$0xff]
    %v149 = vld [vmem:[#allocation2 + $0x298] sm:$0xff]
    %v150 = vld [vmem:[#allocation2 + $0x2a0] sm:$0xff]
    %v151 = vld [vmem:[#allocation2 + $0x2a8] sm:$0xff]
    %v152 = vld [vmem:[#allocation2 + $0x2b0] sm:$0xff]
    %v153 = vld [vmem:[#allocation2 + $0x2b8] sm:$0xff]
    %v154 = vld [vmem:[#allocation2 + $0x2c0] sm:$0xff]
    %v155 = vld [vmem:[#allocation2 + $0x2c8] sm:$0xff]
    %v156 = vld [vmem:[#allocation2 + $0x2d0] sm:$0xff]
    %v157 = vld [vmem:[#allocation2 + $0x2d8] sm:$0xff]
    %v158 = vld [vmem:[#allocation2 + $0x2e0] sm:$0xff]
    %v159 = vld [vmem:[#allocation2 + $0x2e8] sm:$0xff]
    %v160 = vld [vmem:[#allocation2 + $0x2f0] sm:$0xff]
    %v161 = vld [vmem:[#allocation2 + $0x2f8] sm:$0xff]
    %v162 = vld [vmem:[#allocation2 + $0x300] sm:$0xff]
    %v163 = vld [vmem:[#allocation2 + $0x308] sm:$0xff]
    %v164 = vld [vmem:[#allocation2 + $0x310] sm:$0xff]
    %v165 = vld [vmem:[#allocation2 + $0x318] sm:$0xff]
    %v166 = vld [vmem:[#allocation2 + $0x320] sm:$0xff]
    %v167 = vld [vmem:[#allocation2 + $0x328] sm:$0xff]
    %v168 = vld [vmem:[#allocation2 + $0x330] sm:$0xff]
    %v169 = vld [vmem:[#allocation2 + $0x338] sm:$0xff]
    %v170 = vld [vmem:[#allocation2 + $0x340] sm:$0xff]
    %v171 = vld [vmem:[#allocation2 + $0x348] sm:$0xff]
    %v172 = vld [vmem:[#allocation2 + $0x350] sm:$0xff]
    %v173 = vld [vmem:[#allocation2 + $0x358] sm:$0xff]
    %v174 = vld [vmem:[#allocation2 + $0x360] sm:$0xff]
    %v175 = vld [vmem:[#allocation2 + $0x368] sm:$0xff]
    %v176 = vld [vmem:[#allocation2 + $0x370] sm:$0xff]
    %v177 = vld [vmem:[#allocation2 + $0x378] sm:$0xff]
    %v178 = vld [vmem:[#allocation2 + $0x380] sm:$0xff]
    %v179 = vld [vmem:[#allocation2 + $0x388] sm:$0xff]
    %v180 = vld [vmem:[#allocation2 + $0x390] sm:$0xff]
    %v181 = vld [vmem:[#allocation2 + $0x398] sm:$0xff]
    %v182 = vld [vmem:[#allocation2 + $0x3a0] sm:$0xff]
    %v183 = vld [vmem:[#allocation2 + $0x3a8] sm:$0xff]
    %v184 = vld [vmem:[#allocation2 + $0x3b0] sm:$0xff]
    %v185 = vld [vmem:[#allocation2 + $0x3b8] sm:$0xff]
    %v186 = vld [vmem:[#allocation2 + $0x3c0] sm:$0xff]
    %v187 = vld [vmem:[#allocation2 + $0x3c8] sm:$0xff]
    %v188 = vld [vmem:[#allocation2 + $0x3d0] sm:$0xff]
    %v189 = vld [vmem:[#allocation2 + $0x3d8] sm:$0xff]
    %v190 = vld [vmem:[#allocation2 + $0x3e0] sm:$0xff]
    %v191 = vld [vmem:[#allocation2 + $0x3e8] sm:$0xff]
    %v192 = vld [vmem:[#allocation2 + $0x3f0] sm:$0xff]
    %v193 = vld [vmem:[#allocation2 + $0x3f8] sm:$0xff]
    %v194 = vld [vmem:[#allocation2 + $0x400] sm:$0xff]
    %v195 = vld [vmem:[#allocation2 + $0x408] sm:$0xff]
    %v196 = vld [vmem:[#allocation2 + $0x410] sm:$0xff]
    %v197 = vld [vmem:[#allocation2 + $0x418] sm:$0xff]
    %v198 = vld [vmem:[#allocation2 + $0x420] sm:$0xff]
    %v199 = vld [vmem:[#allocation2 + $0x428] sm:$0xff]
    %v200 = vld [vmem:[#allocation2 + $0x430] sm:$0xff]
    %v201 = vld [vmem:[#allocation2 + $0x438] sm:$0xff]
    %v202 = vld [vmem:[#allocation2 + $0x440] sm:$0xff]
    %v203 = vld [vmem:[#allocation2 + $0x448] sm:$0xff]
    %v204 = vld [vmem:[#allocation2 + $0x450] sm:$0xff]
    %v205 = vld [vmem:[#allocation2 + $0x458] sm:$0xff]
    %v206 = vld [vmem:[#allocation2 + $0x460] sm:$0xff]
    %v207 = vld [vmem:[#allocation2 + $0x468] sm:$0xff]
    %v208 = vld [vmem:[#allocation2 + $0x470] sm:$0xff]
    %v209 = vld [vmem:[#allocation2 + $0x478] sm:$0xff]
    %v210 = vld [vmem:[#allocation2 + $0x480] sm:$0xff]
    %v211 = vld [vmem:[#allocation2 + $0x488] sm:$0xff]
    %v212 = vld [vmem:[#allocation2 + $0x490] sm:$0xff]
    %v213 = vld [vmem:[#allocation2 + $0x498] sm:$0xff]
    %v214 = vld [vmem:[#allocation2 + $0x4a0] sm:$0xff]
    %v215 = vld [vmem:[#allocation2 + $0x4a8] sm:$0xff]
    %v216 = vld [vmem:[#allocation2 + $0x4b0] sm:$0xff]
    %v217 = vld [vmem:[#allocation2 + $0x4b8] sm:$0xff]
    %v218 = vld [vmem:[#allocation2 + $0x4c0] sm:$0xff]
    %v219 = vld [vmem:[#allocation2 + $0x4c8] sm:$0xff]
    %v220 = vld [vmem:[#allocation2 + $0x4d0] sm:$0xff]
    %v221 = vld [vmem:[#allocation2 + $0x4d8] sm:$0xff]
    %v222 = vld [vmem:[#allocation2 + $0x4e0] sm:$0xff]
    %v223 = vld [vmem:[#allocation2 + $0x4e8] sm:$0xff]
    %v224 = vld [vmem:[#allocation2 + $0x4f0] sm:$0xff]
    %v225 = vld [vmem:[#allocation2 + $0x4f8] sm:$0xff]
    %v226 = vld [vmem:[#allocation2 + $0x500] sm:$0xff]
    %v227 = vld [vmem:[#allocation2 + $0x508] sm:$0xff]
    %v228 = vld [vmem:[#allocation2 + $0x510] sm:$0xff]
    %v229 = vld [vmem:[#allocation2 + $0x518] sm:$0xff]
    %v230 = vld [vmem:[#allocation2 + $0x520] sm:$0xff]
    %v231 = vld [vmem:[#allocation2 + $0x528] sm:$0xff]
    %v232 = vld [vmem:[#allocation2 + $0x530] sm:$0xff]
    %v233 = vld [vmem:[#allocation2 + $0x538] sm:$0xff]
    %v234 = vld [vmem:[#allocation2 + $0x540] sm:$0xff]
    %v235 = vld [vmem:[#allocation2 + $0x548] sm:$0xff]
    %v236 = vld [vmem:[#allocation2 + $0x550] sm:$0xff]
    %v237 = vld [vmem:[#allocation2 + $0x558] sm:$0xff]
    %v238 = vld [vmem:[#allocation2 + $0x560] sm:$0xff]
    %v239 = vld [vmem:[#allocation2 + $0x568] sm:$0xff]
    %v240 = vld [vmem:[#allocation2 + $0x570] sm:$0xff]
    %v241 = vld [vmem:[#allocation2 + $0x578] sm:$0xff]
    %v242 = vld [vmem:[#allocation2 + $0x580] sm:$0xff]
    %v243 = vld [vmem:[#allocation2 + $0x588] sm:$0xff]
    %v244 = vld [vmem:[#allocation2 + $0x590] sm:$0xff]
    %v245 = vld [vmem:[#allocation2 + $0x598] sm:$0xff]
    %v246 = vld [vmem:[#allocation2 + $0x5a0] sm:$0xff]
    %v247 = vld [vmem:[#allocation2 + $0x5a8] sm:$0xff]
    %v248 = vld [vmem:[#allocation2 + $0x5b0] sm:$0xff]
    %v249 = vld [vmem:[#allocation2 + $0x5b8] sm:$0xff]
    %v250 = vld [vmem:[#allocation2 + $0x5c0] sm:$0xff]
    %v251 = vld [vmem:[#allocation2 + $0x5c8] sm:$0xff]
    %v252 = vld [vmem:[#allocation2 + $0x5d0] sm:$0xff]
    %v253 = vld [vmem:[#allocation2 + $0x5d8] sm:$0xff]
    %v254 = vld [vmem:[#allocation2 + $0x5e0] sm:$0xff]
    %v255 = vld [vmem:[#allocation2 + $0x5e8] sm:$0xff]
    %v256 = vld [vmem:[#allocation2 + $0x5f0] sm:$0xff]
    %v257 = vld [vmem:[#allocation2 + $0x5f8] sm:$0xff]
    %v258 = vld [vmem:[#allocation2 + $0x600] sm:$0xff]
    %v259 = vld [vmem:[#allocation2 + $0x608] sm:$0xff]
    %v260 = vld [vmem:[#allocation2 + $0x610] sm:$0xff]
    %v261 = vld [vmem:[#allocation2 + $0x618] sm:$0xff]
    %v262 = vld [vmem:[#allocation2 + $0x620] sm:$0xff]
    %v263 = vld [vmem:[#allocation2 + $0x628] sm:$0xff]
    %v264 = vld [vmem:[#allocation2 + $0x630] sm:$0xff]
    %v265 = vld [vmem:[#allocation2 + $0x638] sm:$0xff]
    %v266 = vld [vmem:[#allocation2 + $0x640] sm:$0xff]
    %v267 = vld [vmem:[#allocation2 + $0x648] sm:$0xff]
    %v268 = vld [vmem:[#allocation2 + $0x650] sm:$0xff]
    %v269 = vld [vmem:[#allocation2 + $0x658] sm:$0xff]
    %v270 = vld [vmem:[#allocation2 + $0x660] sm:$0xff]
    %v271 = vld [vmem:[#allocation2 + $0x668] sm:$0xff]
    %v272 = vld [vmem:[#allocation2 + $0x670] sm:$0xff]
    %v273 = vld [vmem:[#allocation2 + $0x678] sm:$0xff]
    %v274 = vld [vmem:[#allocation2 + $0x680] sm:$0xff]
    %v275 = vld [vmem:[#allocation2 + $0x688] sm:$0xff]
    %v276 = vld [vmem:[#allocation2 + $0x690] sm:$0xff]
    %v277 = vld [vmem:[#allocation2 + $0x698] sm:$0xff]
    %v278 = vld [vmem:[#allocation2 + $0x6a0] sm:$0xff]
    %v279 = vld [vmem:[#allocation2 + $0x6a8] sm:$0xff]
    %v280 = vld [vmem:[#allocation2 + $0x6b0] sm:$0xff]
    %v281 = vld [vmem:[#allocation2 + $0x6b8] sm:$0xff]
    %v282 = vld [vmem:[#allocation2 + $0x6c0] sm:$0xff]
    %v283 = vld [vmem:[#allocation2 + $0x6c8] sm:$0xff]
    %v284 = vld [vmem:[#allocation2 + $0x6d0] sm:$0xff]
    %v285 = vld [vmem:[#allocation2 + $0x6d8] sm:$0xff]
    %v286 = vld [vmem:[#allocation2 + $0x6e0] sm:$0xff]
    %v287 = vld [vmem:[#allocation2 + $0x6e8] sm:$0xff]
    %v288 = vld [vmem:[#allocation2 + $0x6f0] sm:$0xff]
    %v289 = vld [vmem:[#allocation2 + $0x6f8] sm:$0xff]
    %v290 = vld [vmem:[#allocation2 + $0x700] sm:$0xff]
    %v291 = vld [vmem:[#allocation2 + $0x708] sm:$0xff]
    %v292 = vld [vmem:[#allocation2 + $0x710] sm:$0xff]
    %v293 = vld [vmem:[#allocation2 + $0x718] sm:$0xff]
    %v294 = vld [vmem:[#allocation2 + $0x720] sm:$0xff]
    %v295 = vld [vmem:[#allocation2 + $0x728] sm:$0xff]
    %v296 = vld [vmem:[#allocation2 + $0x730] sm:$0xff]
    %v297 = vld [vmem:[#allocation2 + $0x738] sm:$0xff]
    %v298 = vld [vmem:[#allocation2 + $0x740] sm:$0xff]
    %v299 = vld [vmem:[#allocation2 + $0x748] sm:$0xff]
    %v300 = vld [vmem:[#allocation2 + $0x750] sm:$0xff]
    %v301 = vld [vmem:[#allocation2 + $0x758] sm:$0xff]
    %v302 = vld [vmem:[#allocation2 + $0x760] sm:$0xff]
    %v303 = vld [vmem:[#allocation2 + $0x768] sm:$0xff]
    %v304 = vld [vmem:[#allocation2 + $0x770] sm:$0xff]
    %v305 = vld [vmem:[#allocation2 + $0x778] sm:$0xff]
    %v306 = vld [vmem:[#allocation2 + $0x780] sm:$0xff]
    %v307 = vld [vmem:[#allocation2 + $0x788] sm:$0xff]
    %v308 = vld [vmem:[#allocation2 + $0x790] sm:$0xff]
    %v309 = vld [vmem:[#allocation2 + $0x798] sm:$0xff]
    %v310 = vld [vmem:[#allocation2 + $0x7a0] sm:$0xff]
    %v311 = vld [vmem:[#allocation2 + $0x7a8] sm:$0xff]
    %v312 = vld [vmem:[#allocation2 + $0x7b0] sm:$0xff]
    %v313 = vld [vmem:[#allocation2 + $0x7b8] sm:$0xff]
    %v314 = vld [vmem:[#allocation2 + $0x7c0] sm:$0xff]
    %v315 = vld [vmem:[#allocation2 + $0x7c8] sm:$0xff]
    %v316 = vld [vmem:[#allocation2 + $0x7d0] sm:$0xff]
    %v317 = vld [vmem:[#allocation2 + $0x7d8] sm:$0xff]
    %v318 = vld [vmem:[#allocation2 + $0x7e0] sm:$0xff]
    %v319 = vld [vmem:[#allocation2 + $0x7e8] sm:$0xff]
    %v320 = vld [vmem:[#allocation2 + $0x7f0] sm:$0xff]
    %v321 = vld [vmem:[#allocation2 + $0x7f8] sm:$0xff]
    %v322 = vld [vmem:[#allocation2 + $0x800] sm:$0xff]
    %v323 = vld [vmem:[#allocation2 + $0x808] sm:$0xff]
    %v324 = vld [vmem:[#allocation2 + $0x810] sm:$0xff]
    %v325 = vld [vmem:[#allocation2 + $0x818] sm:$0xff]
    %v326 = vld [vmem:[#allocation2 + $0x820] sm:$0xff]
    %v327 = vld [vmem:[#allocation2 + $0x828] sm:$0xff]
    %v328 = vld [vmem:[#allocation2 + $0x830] sm:$0xff]
    %v329 = vld [vmem:[#allocation2 + $0x838] sm:$0xff]
    %v330 = vld [vmem:[#allocation2 + $0x840] sm:$0xff]
    %v331 = vld [vmem:[#allocation2 + $0x848] sm:$0xff]
    %v332 = vld [vmem:[#allocation2 + $0x850] sm:$0xff]
    %v333 = vld [vmem:[#allocation2 + $0x858] sm:$0xff]
    %v334 = vld [vmem:[#allocation2 + $0x860] sm:$0xff]
    %v335 = vld [vmem:[#allocation2 + $0x868] sm:$0xff]
    %v336 = vld [vmem:[#allocation2 + $0x870] sm:$0xff]
    %v337 = vld [vmem:[#allocation2 + $0x878] sm:$0xff]
    %v338 = vld [vmem:[#allocation2 + $0x880] sm:$0xff]
    %v339 = vld [vmem:[#allocation2 + $0x888] sm:$0xff]
    %v340 = vld [vmem:[#allocation2 + $0x890] sm:$0xff]
    %v341 = vld [vmem:[#allocation2 + $0x898] sm:$0xff]
    %v342 = vld [vmem:[#allocation2 + $0x8a0] sm:$0xff]
    %v343 = vld [vmem:[#allocation2 + $0x8a8] sm:$0xff]
    %v344 = vld [vmem:[#allocation2 + $0x8b0] sm:$0xff]
    %v345 = vld [vmem:[#allocation2 + $0x8b8] sm:$0xff]
    %v346 = vld [vmem:[#allocation2 + $0x8c0] sm:$0xff]
    %v347 = vld [vmem:[#allocation2 + $0x8c8] sm:$0xff]
    %v348 = vld [vmem:[#allocation2 + $0x8d0] sm:$0xff]
    %v349 = vld [vmem:[#allocation2 + $0x8d8] sm:$0xff]
    %v350 = vld [vmem:[#allocation2 + $0x8e0] sm:$0xff]
    %v351 = vld [vmem:[#allocation2 + $0x8e8] sm:$0xff]
    %v352 = vld [vmem:[#allocation2 + $0x8f0] sm:$0xff]
    %v353 = vld [vmem:[#allocation2 + $0x8f8] sm:$0xff]
    %v354 = vld [vmem:[#allocation2 + $0x900] sm:$0xff]
    %v355 = vld [vmem:[#allocation2 + $0x908] sm:$0xff]
    %v356 = vld [vmem:[#allocation2 + $0x910] sm:$0xff]
    %v357 = vld [vmem:[#allocation2 + $0x918] sm:$0xff]
    %v358 = vld [vmem:[#allocation2 + $0x920] sm:$0xff]
    %v359 = vld [vmem:[#allocation2 + $0x928] sm:$0xff]
    %v360 = vld [vmem:[#allocation2 + $0x930] sm:$0xff]
    %v361 = vld [vmem:[#allocation2 + $0x938] sm:$0xff]
    %v362 = vld [vmem:[#allocation2 + $0x940] sm:$0xff]
    %v363 = vld [vmem:[#allocation2 + $0x948] sm:$0xff]
    %v364 = vld [vmem:[#allocation2 + $0x950] sm:$0xff]
    %v365 = vld [vmem:[#allocation2 + $0x958] sm:$0xff]
    %v366 = vld [vmem:[#allocation2 + $0x960] sm:$0xff]
    %v367 = vld [vmem:[#allocation2 + $0x968] sm:$0xff]
    %v368 = vld [vmem:[#allocation2 + $0x970] sm:$0xff]
    %v369 = vld [vmem:[#allocation2 + $0x978] sm:$0xff]
    %v370 = vld [vmem:[#allocation2 + $0x980] sm:$0xff]
    %v371 = vld [vmem:[#allocation2 + $0x988] sm:$0xff]
    %v372 = vld [vmem:[#allocation2 + $0x990] sm:$0xff]
    %v373 = vld [vmem:[#allocation2 + $0x998] sm:$0xff]
    %v374 = vld [vmem:[#allocation2 + $0x9a0] sm:$0xff]
    %v375 = vld [vmem:[#allocation2 + $0x9a8] sm:$0xff]
    %v376 = vld [vmem:[#allocation2 + $0x9b0] sm:$0xff]
    %v377 = vld [vmem:[#allocation2 + $0x9b8] sm:$0xff]
    %v378 = vld [vmem:[#allocation2 + $0x9c0] sm:$0xff]
    %v379 = vld [vmem:[#allocation2 + $0x9c8] sm:$0xff]
    %v380 = vld [vmem:[#allocation2 + $0x9d0] sm:$0xff]
    %v381 = vld [vmem:[#allocation2 + $0x9d8] sm:$0xff]
    %v382 = vld [vmem:[#allocation2 + $0x9e0] sm:$0xff]
    %v383 = vld [vmem:[#allocation2 + $0x9e8] sm:$0xff]
    %v384 = vld [vmem:[#allocation2 + $0x9f0] sm:$0xff]
    %v385 = vld [vmem:[#allocation2 + $0x9f8] sm:$0xff]
    %v386 = vld [vmem:[#allocation2 + $0xa00] sm:$0xff]
    %v387 = vld [vmem:[#allocation2 + $0xa08] sm:$0xff]
    %v388 = vld [vmem:[#allocation2 + $0xa10] sm:$0xff]
    %v389 = vld [vmem:[#allocation2 + $0xa18] sm:$0xff]
    %v390 = vld [vmem:[#allocation2 + $0xa20] sm:$0xff]
    %v391 = vld [vmem:[#allocation2 + $0xa28] sm:$0xff]
    %v392 = vld [vmem:[#allocation2 + $0xa30] sm:$0xff]
    %v393 = vld [vmem:[#allocation2 + $0xa38] sm:$0xff]
    %v394 = vld [vmem:[#allocation2 + $0xa40] sm:$0xff]
    %v395 = vld [vmem:[#allocation2 + $0xa48] sm:$0xff]
    %v396 = vld [vmem:[#allocation2 + $0xa50] sm:$0xff]
    %v397 = vld [vmem:[#allocation2 + $0xa58] sm:$0xff]
    %v398 = vld [vmem:[#allocation2 + $0xa60] sm:$0xff]
    %v399 = vld [vmem:[#allocation2 + $0xa68] sm:$0xff]
    %v400 = vld [vmem:[#allocation2 + $0xa70] sm:$0xff]
    %v401 = vld [vmem:[#allocation2 + $0xa78] sm:$0xff]
    %v402 = vld [vmem:[#allocation2 + $0xa80] sm:$0xff]
    %v403 = vld [vmem:[#allocation2 + $0xa88] sm:$0xff]
    %v404 = vld [vmem:[#allocation2 + $0xa90] sm:$0xff]
    %v405 = vld [vmem:[#allocation2 + $0xa98] sm:$0xff]
    %v406 = vld [vmem:[#allocation2 + $0xaa0] sm:$0xff]
    %v407 = vld [vmem:[#allocation2 + $0xaa8] sm:$0xff]
    %v408 = vld [vmem:[#allocation2 + $0xab0] sm:$0xff]
    %v409 = vld [vmem:[#allocation2 + $0xab8] sm:$0xff]
    %v410 = vld [vmem:[#allocation2 + $0xac0] sm:$0xff]
    %v411 = vld [vmem:[#allocation2 + $0xac8] sm:$0xff]
    %v412 = vld [vmem:[#allocation2 + $0xad0] sm:$0xff]
    %v413 = vld [vmem:[#allocation2 + $0xad8] sm:$0xff]
    %v414 = vld [vmem:[#allocation2 + $0xae0] sm:$0xff]
    %v415 = vld [vmem:[#allocation2 + $0xae8] sm:$0xff]
    %v416 = vld [vmem:[#allocation2 + $0xaf0] sm:$0xff]
    %v417 = vld [vmem:[#allocation2 + $0xaf8] sm:$0xff]
    %v418 = vld [vmem:[#allocation2 + $0xb00] sm:$0xff]
    %v419 = vld [vmem:[#allocation2 + $0xb08] sm:$0xff]
    %v420 = vld [vmem:[#allocation2 + $0xb10] sm:$0xff]
    %v421 = vld [vmem:[#allocation2 + $0xb18] sm:$0xff]
    %v422 = vld [vmem:[#allocation2 + $0xb20] sm:$0xff]
    %v423 = vld [vmem:[#allocation2 + $0xb28] sm:$0xff]
    %v424 = vld [vmem:[#allocation2 + $0xb30] sm:$0xff]
    %v425 = vld [vmem:[#allocation2 + $0xb38] sm:$0xff]
    %v426 = vld [vmem:[#allocation2 + $0xb40] sm:$0xff]
    %v427 = vld [vmem:[#allocation2 + $0xb48] sm:$0xff]
    %v428 = vld [vmem:[#allocation2 + $0xb50] sm:$0xff]
    %v429 = vld [vmem:[#allocation2 + $0xb58] sm:$0xff]
    %v430 = vld [vmem:[#allocation2 + $0xb60] sm:$0xff]
    %v431 = vld [vmem:[#allocation2 + $0xb68] sm:$0xff]
    %v432 = vld [vmem:[#allocation2 + $0xb70] sm:$0xff]
    %v433 = vld [vmem:[#allocation2 + $0xb78] sm:$0xff]
    %v434 = vld [vmem:[#allocation2 + $0xb80] sm:$0xff]
    %v435 = vld [vmem:[#allocation2 + $0xb88] sm:$0xff]
    %v436 = vld [vmem:[#allocation2 + $0xb90] sm:$0xff]
    %v437 = vld [vmem:[#allocation2 + $0xb98] sm:$0xff]
    %v438 = vld [vmem:[#allocation2 + $0xba0] sm:$0xff]
    %v439 = vld [vmem:[#allocation2 + $0xba8] sm:$0xff]
    %v440 = vld [vmem:[#allocation2 + $0xbb0] sm:$0xff]
    %v441 = vld [vmem:[#allocation2 + $0xbb8] sm:$0xff]
    %v442 = vld [vmem:[#allocation2 + $0xbc0] sm:$0xff]
    %v443 = vld [vmem:[#allocation2 + $0xbc8] sm:$0xff]
    %v444 = vld [vmem:[#allocation2 + $0xbd0] sm:$0xff]
    %v445 = vld [vmem:[#allocation2 + $0xbd8] sm:$0xff]
    %v446 = vld [vmem:[#allocation2 + $0xbe0] sm:$0xff]
    %v447 = vld [vmem:[#allocation2 + $0xbe8] sm:$0xff]
    %v448 = vld [vmem:[#allocation2 + $0xbf0] sm:$0xff]
    %v449 = vld [vmem:[#allocation2 + $0xbf8] sm:$0xff]
    %v450 = vld [vmem:[#allocation4] sm:$0x3f]
    %v452 = vperm.slane %v450, 0
    %v453 = vperm.slane %v450, 1
    %v454 = vperm.slane %v450, 2
    %v455 = vperm.slane %v450, 3
    %v456 = vperm.slane %v450, 4
    %v457 = vperm.slane %v450, 5
    %v468 = vunpack.c.l.b16 %v62
    %v469 = vunpack.c.h.b16 %v62
    %v470 = vunpack.c.l.b16 %v63
    %v471 = vunpack.c.h.b16 %v63
    %v472 = vunpack.c.l.b16 %v64
    %v473 = vunpack.c.h.b16 %v64
    %v474 = vunpack.c.l.b16 %v65
    %v475 = vunpack.c.h.b16 %v65
    %v476 = vpack.c.b16 %v468, %v468
    %v477 = vpack.c.b16 %v469, %v469
    %v478 = vpack.c.b16 %v470, %v470
    %v479 = vpack.c.b16 %v471, %v471
    %v480 = vpack.c.b16 %v472, %v472
    %v481 = vpack.c.b16 %v473, %v473
    %v482 = vpack.c.b16 %v474, %v474
    %v483 = vpack.c.b16 %v475, %v475
    %v876 = vunpack.c.l.b16 %v66
    %v877 = vunpack.c.h.b16 %v66
    %v878 = vunpack.c.l.b16 %v67
    %v879 = vunpack.c.h.b16 %v67
    %v880 = vunpack.c.l.b16 %v68
    %v881 = vunpack.c.h.b16 %v68
    %v882 = vunpack.c.l.b16 %v69
    %v883 = vunpack.c.h.b16 %v69
    %v884 = vunpack.c.l.b16 %v70
    %v885 = vunpack.c.h.b16 %v70
    %v886 = vunpack.c.l.b16 %v71
    %v887 = vunpack.c.h.b16 %v71
    %v888 = vunpack.c.l.b16 %v72
    %v889 = vunpack.c.h.b16 %v72
    %v890 = vunpack.c.l.b16 %v73
    %v891 = vunpack.c.h.b16 %v73
    %v892 = vunpack.c.l.b16 %v74
    %v893 = vunpack.c.h.b16 %v74
    %v894 = vunpack.c.l.b16 %v75
    %v895 = vunpack.c.h.b16 %v75
    %v896 = vunpack.c.l.b16 %v76
    %v897 = vunpack.c.h.b16 %v76
    %v898 = vunpack.c.l.b16 %v77
    %v899 = vunpack.c.h.b16 %v77
    %v900 = vunpack.c.l.b16 %v78
    %v901 = vunpack.c.h.b16 %v78
    %v902 = vunpack.c.l.b16 %v79
    %v903 = vunpack.c.h.b16 %v79
    %v904 = vunpack.c.l.b16 %v80
    %v905 = vunpack.c.h.b16 %v80
    %v906 = vunpack.c.l.b16 %v81
    %v907 = vunpack.c.h.b16 %v81
    %v908 = vunpack.c.l.b16 %v82
    %v909 = vunpack.c.h.b16 %v82
    %v910 = vunpack.c.l.b16 %v83
    %v911 = vunpack.c.h.b16 %v83
    %v912 = vunpack.c.l.b16 %v84
    %v913 = vunpack.c.h.b16 %v84
    %v914 = vunpack.c.l.b16 %v85
    %v915 = vunpack.c.h.b16 %v85
    %v916 = vunpack.c.l.b16 %v86
    %v917 = vunpack.c.h.b16 %v86
    %v918 = vunpack.c.l.b16 %v87
    %v919 = vunpack.c.h.b16 %v87
    %v920 = vunpack.c.l.b16 %v88
    %v921 = vunpack.c.h.b16 %v88
    %v922 = vunpack.c.l.b16 %v89
    %v923 = vunpack.c.h.b16 %v89
    %v924 = vunpack.c.l.b16 %v90
    %v925 = vunpack.c.h.b16 %v90
    %v926 = vunpack.c.l.b16 %v91
    %v927 = vunpack.c.h.b16 %v91
    %v928 = vunpack.c.l.b16 %v92
    %v929 = vunpack.c.h.b16 %v92
    %v930 = vunpack.c.l.b16 %v93
    %v931 = vunpack.c.h.b16 %v93
    %v932 = vunpack.c.l.b16 %v94
    %v933 = vunpack.c.h.b16 %v94
    %v934 = vunpack.c.l.b16 %v95
    %v935 = vunpack.c.h.b16 %v95
    %v936 = vunpack.c.l.b16 %v96
    %v937 = vunpack.c.h.b16 %v96
    %v938 = vunpack.c.l.b16 %v97
    %v939 = vunpack.c.h.b16 %v97
    %v940 = vunpack.c.l.b16 %v98
    %v941 = vunpack.c.h.b16 %v98
    %v942 = vunpack.c.l.b16 %v99
    %v943 = vunpack.c.h.b16 %v99
    %v944 = vunpack.c.l.b16 %v100
    %v945 = vunpack.c.h.b16 %v100
    %v946 = vunpack.c.l.b16 %v101
    %v947 = vunpack.c.h.b16 %v101
    %v948 = vunpack.c.l.b16 %v102
    %v949 = vunpack.c.h.b16 %v102
    %v950 = vunpack.c.l.b16 %v103
    %v951 = vunpack.c.h.b16 %v103
    %v952 = vunpack.c.l.b16 %v104
    %v953 = vunpack.c.h.b16 %v104
    %v954 = vunpack.c.l.b16 %v105
    %v955 = vunpack.c.h.b16 %v105
    %v956 = vunpack.c.l.b16 %v106
    %v957 = vunpack.c.h.b16 %v106
    %v958 = vunpack.c.l.b16 %v107
    %v959 = vunpack.c.h.b16 %v107
    %v960 = vunpack.c.l.b16 %v108
    %v961 = vunpack.c.h.b16 %v108
    %v962 = vunpack.c.l.b16 %v109
    %v963 = vunpack.c.h.b16 %v109
    %v964 = vunpack.c.l.b16 %v110
    %v965 = vunpack.c.h.b16 %v110
    %v966 = vunpack.c.l.b16 %v111
    %v967 = vunpack.c.h.b16 %v111
    %v968 = vunpack.c.l.b16 %v112
    %v969 = vunpack.c.h.b16 %v112
    %v970 = vunpack.c.l.b16 %v113
    %v971 = vunpack.c.h.b16 %v113
    %v972 = vunpack.c.l.b16 %v114
    %v973 = vunpack.c.h.b16 %v114
    %v974 = vunpack.c.l.b16 %v115
    %v975 = vunpack.c.h.b16 %v115
    %v976 = vunpack.c.l.b16 %v116
    %v977 = vunpack.c.h.b16 %v116
    %v978 = vunpack.c.l.b16 %v117
    %v979 = vunpack.c.h.b16 %v117
    %v980 = vunpack.c.l.b16 %v118
    %v981 = vunpack.c.h.b16 %v118
    %v982 = vunpack.c.l.b16 %v119
    %v983 = vunpack.c.h.b16 %v119
    %v984 = vunpack.c.l.b16 %v120
    %v985 = vunpack.c.h.b16 %v120
    %v986 = vunpack.c.l.b16 %v121
    %v987 = vunpack.c.h.b16 %v121
    %v988 = vunpack.c.l.b16 %v122
    %v989 = vunpack.c.h.b16 %v122
    %v990 = vunpack.c.l.b16 %v123
    %v991 = vunpack.c.h.b16 %v123
    %v992 = vunpack.c.l.b16 %v124
    %v993 = vunpack.c.h.b16 %v124
    %v994 = vunpack.c.l.b16 %v125
    %v995 = vunpack.c.h.b16 %v125
    %v996 = vunpack.c.l.b16 %v126
    %v997 = vunpack.c.h.b16 %v126
    %v998 = vunpack.c.l.b16 %v127
    %v999 = vunpack.c.h.b16 %v127
    %v1000 = vunpack.c.l.b16 %v128
    %v1001 = vunpack.c.h.b16 %v128
    %v1002 = vunpack.c.l.b16 %v129
    %v1003 = vunpack.c.h.b16 %v129
    %v1004 = vunpack.c.l.b16 %v130
    %v1005 = vunpack.c.h.b16 %v130
    %v1006 = vunpack.c.l.b16 %v131
    %v1007 = vunpack.c.h.b16 %v131
    %v1008 = vunpack.c.l.b16 %v132
    %v1009 = vunpack.c.h.b16 %v132
    %v1010 = vunpack.c.l.b16 %v133
    %v1011 = vunpack.c.h.b16 %v133
    %v1012 = vunpack.c.l.b16 %v134
    %v1013 = vunpack.c.h.b16 %v134
    %v1014 = vunpack.c.l.b16 %v135
    %v1015 = vunpack.c.h.b16 %v135
    %v1016 = vunpack.c.l.b16 %v136
    %v1017 = vunpack.c.h.b16 %v136
    %v1018 = vunpack.c.l.b16 %v137
    %v1019 = vunpack.c.h.b16 %v137
    %v1020 = vunpack.c.l.b16 %v138
    %v1021 = vunpack.c.h.b16 %v138
    %v1022 = vunpack.c.l.b16 %v139
    %v1023 = vunpack.c.h.b16 %v139
    %v1024 = vunpack.c.l.b16 %v140
    %v1025 = vunpack.c.h.b16 %v140
    %v1026 = vunpack.c.l.b16 %v141
    %v1027 = vunpack.c.h.b16 %v141
    %v1028 = vunpack.c.l.b16 %v142
    %v1029 = vunpack.c.h.b16 %v142
    %v1030 = vunpack.c.l.b16 %v143
    %v1031 = vunpack.c.h.b16 %v143
    %v1032 = vunpack.c.l.b16 %v144
    %v1033 = vunpack.c.h.b16 %v144
    %v1034 = vunpack.c.l.b16 %v145
    %v1035 = vunpack.c.h.b16 %v145
    %v1036 = vunpack.c.l.b16 %v146
    %v1037 = vunpack.c.h.b16 %v146
    %v1038 = vunpack.c.l.b16 %v147
    %v1039 = vunpack.c.h.b16 %v147
    %v1040 = vunpack.c.l.b16 %v148
    %v1041 = vunpack.c.h.b16 %v148
    %v1042 = vunpack.c.l.b16 %v149
    %v1043 = vunpack.c.h.b16 %v149
    %v1044 = vunpack.c.l.b16 %v150
    %v1045 = vunpack.c.h.b16 %v150
    %v1046 = vunpack.c.l.b16 %v151
    %v1047 = vunpack.c.h.b16 %v151
    %v1048 = vunpack.c.l.b16 %v152
    %v1049 = vunpack.c.h.b16 %v152
    %v1050 = vunpack.c.l.b16 %v153
    %v1051 = vunpack.c.h.b16 %v153
    %v1052 = vunpack.c.l.b16 %v154
    %v1053 = vunpack.c.h.b16 %v154
    %v1054 = vunpack.c.l.b16 %v155
    %v1055 = vunpack.c.h.b16 %v155
    %v1056 = vunpack.c.l.b16 %v156
    %v1057 = vunpack.c.h.b16 %v156
    %v1058 = vunpack.c.l.b16 %v157
    %v1059 = vunpack.c.h.b16 %v157
    %v1060 = vunpack.c.l.b16 %v158
    %v1061 = vunpack.c.h.b16 %v158
    %v1062 = vunpack.c.l.b16 %v159
    %v1063 = vunpack.c.h.b16 %v159
    %v1064 = vunpack.c.l.b16 %v160
    %v1065 = vunpack.c.h.b16 %v160
    %v1066 = vunpack.c.l.b16 %v161
    %v1067 = vunpack.c.h.b16 %v161
    %v1068 = vunpack.c.l.b16 %v162
    %v1069 = vunpack.c.h.b16 %v162
    %v1070 = vunpack.c.l.b16 %v163
    %v1071 = vunpack.c.h.b16 %v163
    %v1072 = vunpack.c.l.b16 %v164
    %v1073 = vunpack.c.h.b16 %v164
    %v1074 = vunpack.c.l.b16 %v165
    %v1075 = vunpack.c.h.b16 %v165
    %v1076 = vunpack.c.l.b16 %v166
    %v1077 = vunpack.c.h.b16 %v166
    %v1078 = vunpack.c.l.b16 %v167
    %v1079 = vunpack.c.h.b16 %v167
    %v1080 = vunpack.c.l.b16 %v168
    %v1081 = vunpack.c.h.b16 %v168
    %v1082 = vunpack.c.l.b16 %v169
    %v1083 = vunpack.c.h.b16 %v169
    %v1084 = vunpack.c.l.b16 %v170
    %v1085 = vunpack.c.h.b16 %v170
    %v1086 = vunpack.c.l.b16 %v171
    %v1087 = vunpack.c.h.b16 %v171
    %v1088 = vunpack.c.l.b16 %v172
    %v1089 = vunpack.c.h.b16 %v172
    %v1090 = vunpack.c.l.b16 %v173
    %v1091 = vunpack.c.h.b16 %v173
    %v1092 = vunpack.c.l.b16 %v174
    %v1093 = vunpack.c.h.b16 %v174
    %v1094 = vunpack.c.l.b16 %v175
    %v1095 = vunpack.c.h.b16 %v175
    %v1096 = vunpack.c.l.b16 %v176
    %v1097 = vunpack.c.h.b16 %v176
    %v1098 = vunpack.c.l.b16 %v177
    %v1099 = vunpack.c.h.b16 %v177
    %v1100 = vunpack.c.l.b16 %v178
    %v1101 = vunpack.c.h.b16 %v178
    %v1102 = vunpack.c.l.b16 %v179
    %v1103 = vunpack.c.h.b16 %v179
    %v1104 = vunpack.c.l.b16 %v180
    %v1105 = vunpack.c.h.b16 %v180
    %v1106 = vunpack.c.l.b16 %v181
    %v1107 = vunpack.c.h.b16 %v181
    %v1108 = vunpack.c.l.b16 %v182
    %v1109 = vunpack.c.h.b16 %v182
    %v1110 = vunpack.c.l.b16 %v183
    %v1111 = vunpack.c.h.b16 %v183
    %v1112 = vunpack.c.l.b16 %v184
    %v1113 = vunpack.c.h.b16 %v184
    %v1114 = vunpack.c.l.b16 %v185
    %v1115 = vunpack.c.h.b16 %v185
    %v1116 = vunpack.c.l.b16 %v186
    %v1117 = vunpack.c.h.b16 %v186
    %v1118 = vunpack.c.l.b16 %v187
    %v1119 = vunpack.c.h.b16 %v187
    %v1120 = vunpack.c.l.b16 %v188
    %v1121 = vunpack.c.h.b16 %v188
    %v1122 = vunpack.c.l.b16 %v189
    %v1123 = vunpack.c.h.b16 %v189
    %v1124 = vunpack.c.l.b16 %v190
    %v1125 = vunpack.c.h.b16 %v190
    %v1126 = vunpack.c.l.b16 %v191
    %v1127 = vunpack.c.h.b16 %v191
    %v1128 = vunpack.c.l.b16 %v192
    %v1129 = vunpack.c.h.b16 %v192
    %v1130 = vunpack.c.l.b16 %v193
    %v1131 = vunpack.c.h.b16 %v193
    %v1132 = vunpack.c.l.b16 %v194
    %v1133 = vunpack.c.h.b16 %v194
    %v1134 = vunpack.c.l.b16 %v195
    %v1135 = vunpack.c.h.b16 %v195
    %v1136 = vunpack.c.l.b16 %v196
    %v1137 = vunpack.c.h.b16 %v196
    %v1138 = vunpack.c.l.b16 %v197
    %v1139 = vunpack.c.h.b16 %v197
    %v1140 = vunpack.c.l.b16 %v198
    %v1141 = vunpack.c.h.b16 %v198
    %v1142 = vunpack.c.l.b16 %v199
    %v1143 = vunpack.c.h.b16 %v199
    %v1144 = vunpack.c.l.b16 %v200
    %v1145 = vunpack.c.h.b16 %v200
    %v1146 = vunpack.c.l.b16 %v201
    %v1147 = vunpack.c.h.b16 %v201
    %v1148 = vunpack.c.l.b16 %v202
    %v1149 = vunpack.c.h.b16 %v202
    %v1150 = vunpack.c.l.b16 %v203
    %v1151 = vunpack.c.h.b16 %v203
    %v1152 = vunpack.c.l.b16 %v204
    %v1153 = vunpack.c.h.b16 %v204
    %v1154 = vunpack.c.l.b16 %v205
    %v1155 = vunpack.c.h.b16 %v205
    %v1156 = vunpack.c.l.b16 %v206
    %v1157 = vunpack.c.h.b16 %v206
    %v1158 = vunpack.c.l.b16 %v207
    %v1159 = vunpack.c.h.b16 %v207
    %v1160 = vunpack.c.l.b16 %v208
    %v1161 = vunpack.c.h.b16 %v208
    %v1162 = vunpack.c.l.b16 %v209
    %v1163 = vunpack.c.h.b16 %v209
    %v1164 = vunpack.c.l.b16 %v210
    %v1165 = vunpack.c.h.b16 %v210
    %v1166 = vunpack.c.l.b16 %v211
    %v1167 = vunpack.c.h.b16 %v211
    %v1168 = vunpack.c.l.b16 %v212
    %v1169 = vunpack.c.h.b16 %v212
    %v1170 = vunpack.c.l.b16 %v213
    %v1171 = vunpack.c.h.b16 %v213
    %v1172 = vunpack.c.l.b16 %v214
    %v1173 = vunpack.c.h.b16 %v214
    %v1174 = vunpack.c.l.b16 %v215
    %v1175 = vunpack.c.h.b16 %v215
    %v1176 = vunpack.c.l.b16 %v216
    %v1177 = vunpack.c.h.b16 %v216
    %v1178 = vunpack.c.l.b16 %v217
    %v1179 = vunpack.c.h.b16 %v217
    %v1180 = vunpack.c.l.b16 %v218
    %v1181 = vunpack.c.h.b16 %v218
    %v1182 = vunpack.c.l.b16 %v219
    %v1183 = vunpack.c.h.b16 %v219
    %v1184 = vunpack.c.l.b16 %v220
    %v1185 = vunpack.c.h.b16 %v220
    %v1186 = vunpack.c.l.b16 %v221
    %v1187 = vunpack.c.h.b16 %v221
    %v1188 = vunpack.c.l.b16 %v222
    %v1189 = vunpack.c.h.b16 %v222
    %v1190 = vunpack.c.l.b16 %v223
    %v1191 = vunpack.c.h.b16 %v223
    %v1192 = vunpack.c.l.b16 %v224
    %v1193 = vunpack.c.h.b16 %v224
    %v1194 = vunpack.c.l.b16 %v225
    %v1195 = vunpack.c.h.b16 %v225
    %v1196 = vunpack.c.l.b16 %v226
    %v1197 = vunpack.c.h.b16 %v226
    %v1198 = vunpack.c.l.b16 %v227
    %v1199 = vunpack.c.h.b16 %v227
    %v1200 = vunpack.c.l.b16 %v228
    %v1201 = vunpack.c.h.b16 %v228
    %v1202 = vunpack.c.l.b16 %v229
    %v1203 = vunpack.c.h.b16 %v229
    %v1204 = vunpack.c.l.b16 %v230
    %v1205 = vunpack.c.h.b16 %v230
    %v1206 = vunpack.c.l.b16 %v231
    %v1207 = vunpack.c.h.b16 %v231
    %v1208 = vunpack.c.l.b16 %v232
    %v1209 = vunpack.c.h.b16 %v232
    %v1210 = vunpack.c.l.b16 %v233
    %v1211 = vunpack.c.h.b16 %v233
    %v1212 = vunpack.c.l.b16 %v234
    %v1213 = vunpack.c.h.b16 %v234
    %v1214 = vunpack.c.l.b16 %v235
    %v1215 = vunpack.c.h.b16 %v235
    %v1216 = vunpack.c.l.b16 %v236
    %v1217 = vunpack.c.h.b16 %v236
    %v1218 = vunpack.c.l.b16 %v237
    %v1219 = vunpack.c.h.b16 %v237
    %v1220 = vunpack.c.l.b16 %v238
    %v1221 = vunpack.c.h.b16 %v238
    %v1222 = vunpack.c.l.b16 %v239
    %v1223 = vunpack.c.h.b16 %v239
    %v1224 = vunpack.c.l.b16 %v240
    %v1225 = vunpack.c.h.b16 %v240
    %v1226 = vunpack.c.l.b16 %v241
    %v1227 = vunpack.c.h.b16 %v241
    %v1228 = vunpack.c.l.b16 %v242
    %v1229 = vunpack.c.h.b16 %v242
    %v1230 = vunpack.c.l.b16 %v243
    %v1231 = vunpack.c.h.b16 %v243
    %v1232 = vunpack.c.l.b16 %v244
    %v1233 = vunpack.c.h.b16 %v244
    %v1234 = vunpack.c.l.b16 %v245
    %v1235 = vunpack.c.h.b16 %v245
    %v1236 = vunpack.c.l.b16 %v246
    %v1237 = vunpack.c.h.b16 %v246
    %v1238 = vunpack.c.l.b16 %v247
    %v1239 = vunpack.c.h.b16 %v247
    %v1240 = vunpack.c.l.b16 %v248
    %v1241 = vunpack.c.h.b16 %v248
    %v1242 = vunpack.c.l.b16 %v249
    %v1243 = vunpack.c.h.b16 %v249
    %v1244 = vunpack.c.l.b16 %v250
    %v1245 = vunpack.c.h.b16 %v250
    %v1246 = vunpack.c.l.b16 %v251
    %v1247 = vunpack.c.h.b16 %v251
    %v1248 = vunpack.c.l.b16 %v252
    %v1249 = vunpack.c.h.b16 %v252
    %v1250 = vunpack.c.l.b16 %v253
    %v1251 = vunpack.c.h.b16 %v253
    %v1252 = vunpack.c.l.b16 %v254
    %v1253 = vunpack.c.h.b16 %v254
    %v1254 = vunpack.c.l.b16 %v255
    %v1255 = vunpack.c.h.b16 %v255
    %v1256 = vunpack.c.l.b16 %v256
    %v1257 = vunpack.c.h.b16 %v256
    %v1258 = vunpack.c.l.b16 %v257
    %v1259 = vunpack.c.h.b16 %v257
    %v1260 = vunpack.c.l.b16 %v258
    %v1261 = vunpack.c.h.b16 %v258
    %v1262 = vunpack.c.l.b16 %v259
    %v1263 = vunpack.c.h.b16 %v259
    %v1264 = vunpack.c.l.b16 %v260
    %v1265 = vunpack.c.h.b16 %v260
    %v1266 = vunpack.c.l.b16 %v261
    %v1267 = vunpack.c.h.b16 %v261
    %v1268 = vunpack.c.l.b16 %v262
    %v1269 = vunpack.c.h.b16 %v262
    %v1270 = vunpack.c.l.b16 %v263
    %v1271 = vunpack.c.h.b16 %v263
    %v1272 = vunpack.c.l.b16 %v264
    %v1273 = vunpack.c.h.b16 %v264
    %v1274 = vunpack.c.l.b16 %v265
    %v1275 = vunpack.c.h.b16 %v265
    %v1276 = vunpack.c.l.b16 %v266
    %v1277 = vunpack.c.h.b16 %v266
    %v1278 = vunpack.c.l.b16 %v267
    %v1279 = vunpack.c.h.b16 %v267
    %v1280 = vunpack.c.l.b16 %v268
    %v1281 = vunpack.c.h.b16 %v268
    %v1282 = vunpack.c.l.b16 %v269
    %v1283 = vunpack.c.h.b16 %v269
    %v1284 = vunpack.c.l.b16 %v270
    %v1285 = vunpack.c.h.b16 %v270
    %v1286 = vunpack.c.l.b16 %v271
    %v1287 = vunpack.c.h.b16 %v271
    %v1288 = vunpack.c.l.b16 %v272
    %v1289 = vunpack.c.h.b16 %v272
    %v1290 = vunpack.c.l.b16 %v273
    %v1291 = vunpack.c.h.b16 %v273
    %v1292 = vunpack.c.l.b16 %v274
    %v1293 = vunpack.c.h.b16 %v274
    %v1294 = vunpack.c.l.b16 %v275
    %v1295 = vunpack.c.h.b16 %v275
    %v1296 = vunpack.c.l.b16 %v276
    %v1297 = vunpack.c.h.b16 %v276
    %v1298 = vunpack.c.l.b16 %v277
    %v1299 = vunpack.c.h.b16 %v277
    %v1300 = vunpack.c.l.b16 %v278
    %v1301 = vunpack.c.h.b16 %v278
    %v1302 = vunpack.c.l.b16 %v279
    %v1303 = vunpack.c.h.b16 %v279
    %v1304 = vunpack.c.l.b16 %v280
    %v1305 = vunpack.c.h.b16 %v280
    %v1306 = vunpack.c.l.b16 %v281
    %v1307 = vunpack.c.h.b16 %v281
    %v1308 = vunpack.c.l.b16 %v282
    %v1309 = vunpack.c.h.b16 %v282
    %v1310 = vunpack.c.l.b16 %v283
    %v1311 = vunpack.c.h.b16 %v283
    %v1312 = vunpack.c.l.b16 %v284
    %v1313 = vunpack.c.h.b16 %v284
    %v1314 = vunpack.c.l.b16 %v285
    %v1315 = vunpack.c.h.b16 %v285
    %v1316 = vunpack.c.l.b16 %v286
    %v1317 = vunpack.c.h.b16 %v286
    %v1318 = vunpack.c.l.b16 %v287
    %v1319 = vunpack.c.h.b16 %v287
    %v1320 = vunpack.c.l.b16 %v288
    %v1321 = vunpack.c.h.b16 %v288
    %v1322 = vunpack.c.l.b16 %v289
    %v1323 = vunpack.c.h.b16 %v289
    %v1324 = vunpack.c.l.b16 %v290
    %v1325 = vunpack.c.h.b16 %v290
    %v1326 = vunpack.c.l.b16 %v291
    %v1327 = vunpack.c.h.b16 %v291
    %v1328 = vunpack.c.l.b16 %v292
    %v1329 = vunpack.c.h.b16 %v292
    %v1330 = vunpack.c.l.b16 %v293
    %v1331 = vunpack.c.h.b16 %v293
    %v1332 = vunpack.c.l.b16 %v294
    %v1333 = vunpack.c.h.b16 %v294
    %v1334 = vunpack.c.l.b16 %v295
    %v1335 = vunpack.c.h.b16 %v295
    %v1336 = vunpack.c.l.b16 %v296
    %v1337 = vunpack.c.h.b16 %v296
    %v1338 = vunpack.c.l.b16 %v297
    %v1339 = vunpack.c.h.b16 %v297
    %v1340 = vunpack.c.l.b16 %v298
    %v1341 = vunpack.c.h.b16 %v298
    %v1342 = vunpack.c.l.b16 %v299
    %v1343 = vunpack.c.h.b16 %v299
    %v1344 = vunpack.c.l.b16 %v300
    %v1345 = vunpack.c.h.b16 %v300
    %v1346 = vunpack.c.l.b16 %v301
    %v1347 = vunpack.c.h.b16 %v301
    %v1348 = vunpack.c.l.b16 %v302
    %v1349 = vunpack.c.h.b16 %v302
    %v1350 = vunpack.c.l.b16 %v303
    %v1351 = vunpack.c.h.b16 %v303
    %v1352 = vunpack.c.l.b16 %v304
    %v1353 = vunpack.c.h.b16 %v304
    %v1354 = vunpack.c.l.b16 %v305
    %v1355 = vunpack.c.h.b16 %v305
    %v1356 = vunpack.c.l.b16 %v306
    %v1357 = vunpack.c.h.b16 %v306
    %v1358 = vunpack.c.l.b16 %v307
    %v1359 = vunpack.c.h.b16 %v307
    %v1360 = vunpack.c.l.b16 %v308
    %v1361 = vunpack.c.h.b16 %v308
    %v1362 = vunpack.c.l.b16 %v309
    %v1363 = vunpack.c.h.b16 %v309
    %v1364 = vunpack.c.l.b16 %v310
    %v1365 = vunpack.c.h.b16 %v310
    %v1366 = vunpack.c.l.b16 %v311
    %v1367 = vunpack.c.h.b16 %v311
    %v1368 = vunpack.c.l.b16 %v312
    %v1369 = vunpack.c.h.b16 %v312
    %v1370 = vunpack.c.l.b16 %v313
    %v1371 = vunpack.c.h.b16 %v313
    %v1372 = vunpack.c.l.b16 %v314
    %v1373 = vunpack.c.h.b16 %v314
    %v1374 = vunpack.c.l.b16 %v315
    %v1375 = vunpack.c.h.b16 %v315
    %v1376 = vunpack.c.l.b16 %v316
    %v1377 = vunpack.c.h.b16 %v316
    %v1378 = vunpack.c.l.b16 %v317
    %v1379 = vunpack.c.h.b16 %v317
    %v1380 = vunpack.c.l.b16 %v318
    %v1381 = vunpack.c.h.b16 %v318
    %v1382 = vunpack.c.l.b16 %v319
    %v1383 = vunpack.c.h.b16 %v319
    %v1384 = vunpack.c.l.b16 %v320
    %v1385 = vunpack.c.h.b16 %v320
    %v1386 = vunpack.c.l.b16 %v321
    %v1387 = vunpack.c.h.b16 %v321
    %v1388 = vunpack.c.l.b16 %v322
    %v1389 = vunpack.c.h.b16 %v322
    %v1390 = vunpack.c.l.b16 %v323
    %v1391 = vunpack.c.h.b16 %v323
    %v1392 = vunpack.c.l.b16 %v324
    %v1393 = vunpack.c.h.b16 %v324
    %v1394 = vunpack.c.l.b16 %v325
    %v1395 = vunpack.c.h.b16 %v325
    %v1396 = vunpack.c.l.b16 %v326
    %v1397 = vunpack.c.h.b16 %v326
    %v1398 = vunpack.c.l.b16 %v327
    %v1399 = vunpack.c.h.b16 %v327
    %v1400 = vunpack.c.l.b16 %v328
    %v1401 = vunpack.c.h.b16 %v328
    %v1402 = vunpack.c.l.b16 %v329
    %v1403 = vunpack.c.h.b16 %v329
    %v1404 = vunpack.c.l.b16 %v330
    %v1405 = vunpack.c.h.b16 %v330
    %v1406 = vunpack.c.l.b16 %v331
    %v1407 = vunpack.c.h.b16 %v331
    %v1408 = vunpack.c.l.b16 %v332
    %v1409 = vunpack.c.h.b16 %v332
    %v1410 = vunpack.c.l.b16 %v333
    %v1411 = vunpack.c.h.b16 %v333
    %v1412 = vunpack.c.l.b16 %v334
    %v1413 = vunpack.c.h.b16 %v334
    %v1414 = vunpack.c.l.b16 %v335
    %v1415 = vunpack.c.h.b16 %v335
    %v1416 = vunpack.c.l.b16 %v336
    %v1417 = vunpack.c.h.b16 %v336
    %v1418 = vunpack.c.l.b16 %v337
    %v1419 = vunpack.c.h.b16 %v337
    %v1420 = vunpack.c.l.b16 %v338
    %v1421 = vunpack.c.h.b16 %v338
    %v1422 = vunpack.c.l.b16 %v339
    %v1423 = vunpack.c.h.b16 %v339
    %v1424 = vunpack.c.l.b16 %v340
    %v1425 = vunpack.c.h.b16 %v340
    %v1426 = vunpack.c.l.b16 %v341
    %v1427 = vunpack.c.h.b16 %v341
    %v1428 = vunpack.c.l.b16 %v342
    %v1429 = vunpack.c.h.b16 %v342
    %v1430 = vunpack.c.l.b16 %v343
    %v1431 = vunpack.c.h.b16 %v343
    %v1432 = vunpack.c.l.b16 %v344
    %v1433 = vunpack.c.h.b16 %v344
    %v1434 = vunpack.c.l.b16 %v345
    %v1435 = vunpack.c.h.b16 %v345
    %v1436 = vunpack.c.l.b16 %v346
    %v1437 = vunpack.c.h.b16 %v346
    %v1438 = vunpack.c.l.b16 %v347
    %v1439 = vunpack.c.h.b16 %v347
    %v1440 = vunpack.c.l.b16 %v348
    %v1441 = vunpack.c.h.b16 %v348
    %v1442 = vunpack.c.l.b16 %v349
    %v1443 = vunpack.c.h.b16 %v349
    %v1444 = vunpack.c.l.b16 %v350
    %v1445 = vunpack.c.h.b16 %v350
    %v1446 = vunpack.c.l.b16 %v351
    %v1447 = vunpack.c.h.b16 %v351
    %v1448 = vunpack.c.l.b16 %v352
    %v1449 = vunpack.c.h.b16 %v352
    %v1450 = vunpack.c.l.b16 %v353
    %v1451 = vunpack.c.h.b16 %v353
    %v1452 = vunpack.c.l.b16 %v354
    %v1453 = vunpack.c.h.b16 %v354
    %v1454 = vunpack.c.l.b16 %v355
    %v1455 = vunpack.c.h.b16 %v355
    %v1456 = vunpack.c.l.b16 %v356
    %v1457 = vunpack.c.h.b16 %v356
    %v1458 = vunpack.c.l.b16 %v357
    %v1459 = vunpack.c.h.b16 %v357
    %v1460 = vunpack.c.l.b16 %v358
    %v1461 = vunpack.c.h.b16 %v358
    %v1462 = vunpack.c.l.b16 %v359
    %v1463 = vunpack.c.h.b16 %v359
    %v1464 = vunpack.c.l.b16 %v360
    %v1465 = vunpack.c.h.b16 %v360
    %v1466 = vunpack.c.l.b16 %v361
    %v1467 = vunpack.c.h.b16 %v361
    %v1468 = vunpack.c.l.b16 %v362
    %v1469 = vunpack.c.h.b16 %v362
    %v1470 = vunpack.c.l.b16 %v363
    %v1471 = vunpack.c.h.b16 %v363
    %v1472 = vunpack.c.l.b16 %v364
    %v1473 = vunpack.c.h.b16 %v364
    %v1474 = vunpack.c.l.b16 %v365
    %v1475 = vunpack.c.h.b16 %v365
    %v1476 = vunpack.c.l.b16 %v366
    %v1477 = vunpack.c.h.b16 %v366
    %v1478 = vunpack.c.l.b16 %v367
    %v1479 = vunpack.c.h.b16 %v367
    %v1480 = vunpack.c.l.b16 %v368
    %v1481 = vunpack.c.h.b16 %v368
    %v1482 = vunpack.c.l.b16 %v369
    %v1483 = vunpack.c.h.b16 %v369
    %v1484 = vunpack.c.l.b16 %v370
    %v1485 = vunpack.c.h.b16 %v370
    %v1486 = vunpack.c.l.b16 %v371
    %v1487 = vunpack.c.h.b16 %v371
    %v1488 = vunpack.c.l.b16 %v372
    %v1489 = vunpack.c.h.b16 %v372
    %v1490 = vunpack.c.l.b16 %v373
    %v1491 = vunpack.c.h.b16 %v373
    %v1492 = vunpack.c.l.b16 %v374
    %v1493 = vunpack.c.h.b16 %v374
    %v1494 = vunpack.c.l.b16 %v375
    %v1495 = vunpack.c.h.b16 %v375
    %v1496 = vunpack.c.l.b16 %v376
    %v1497 = vunpack.c.h.b16 %v376
    %v1498 = vunpack.c.l.b16 %v377
    %v1499 = vunpack.c.h.b16 %v377
    %v1500 = vunpack.c.l.b16 %v378
    %v1501 = vunpack.c.h.b16 %v378
    %v1502 = vunpack.c.l.b16 %v379
    %v1503 = vunpack.c.h.b16 %v379
    %v1504 = vunpack.c.l.b16 %v380
    %v1505 = vunpack.c.h.b16 %v380
    %v1506 = vunpack.c.l.b16 %v381
    %v1507 = vunpack.c.h.b16 %v381
    %v1508 = vunpack.c.l.b16 %v382
    %v1509 = vunpack.c.h.b16 %v382
    %v1510 = vunpack.c.l.b16 %v383
    %v1511 = vunpack.c.h.b16 %v383
    %v1512 = vunpack.c.l.b16 %v384
    %v1513 = vunpack.c.h.b16 %v384
    %v1514 = vunpack.c.l.b16 %v385
    %v1515 = vunpack.c.h.b16 %v385
    %v1516 = vunpack.c.l.b16 %v386
    %v1517 = vunpack.c.h.b16 %v386
    %v1518 = vunpack.c.l.b16 %v387
    %v1519 = vunpack.c.h.b16 %v387
    %v1520 = vunpack.c.l.b16 %v388
    %v1521 = vunpack.c.h.b16 %v388
    %v1522 = vunpack.c.l.b16 %v389
    %v1523 = vunpack.c.h.b16 %v389
    %v1524 = vunpack.c.l.b16 %v390
    %v1525 = vunpack.c.h.b16 %v390
    %v1526 = vunpack.c.l.b16 %v391
    %v1527 = vunpack.c.h.b16 %v391
    %v1528 = vunpack.c.l.b16 %v392
    %v1529 = vunpack.c.h.b16 %v392
    %v1530 = vunpack.c.l.b16 %v393
    %v1531 = vunpack.c.h.b16 %v393
    %v1532 = vunpack.c.l.b16 %v394
    %v1533 = vunpack.c.h.b16 %v394
    %v1534 = vunpack.c.l.b16 %v395
    %v1535 = vunpack.c.h.b16 %v395
    %v1536 = vunpack.c.l.b16 %v396
    %v1537 = vunpack.c.h.b16 %v396
    %v1538 = vunpack.c.l.b16 %v397
    %v1539 = vunpack.c.h.b16 %v397
    %v1540 = vunpack.c.l.b16 %v398
    %v1541 = vunpack.c.h.b16 %v398
    %v1542 = vunpack.c.l.b16 %v399
    %v1543 = vunpack.c.h.b16 %v399
    %v1544 = vunpack.c.l.b16 %v400
    %v1545 = vunpack.c.h.b16 %v400
    %v1546 = vunpack.c.l.b16 %v401
    %v1547 = vunpack.c.h.b16 %v401
    %v1548 = vunpack.c.l.b16 %v402
    %v1549 = vunpack.c.h.b16 %v402
    %v1550 = vunpack.c.l.b16 %v403
    %v1551 = vunpack.c.h.b16 %v403
    %v1552 = vunpack.c.l.b16 %v404
    %v1553 = vunpack.c.h.b16 %v404
    %v1554 = vunpack.c.l.b16 %v405
    %v1555 = vunpack.c.h.b16 %v405
    %v1556 = vunpack.c.l.b16 %v406
    %v1557 = vunpack.c.h.b16 %v406
    %v1558 = vunpack.c.l.b16 %v407
    %v1559 = vunpack.c.h.b16 %v407
    %v1560 = vunpack.c.l.b16 %v408
    %v1561 = vunpack.c.h.b16 %v408
    %v1562 = vunpack.c.l.b16 %v409
    %v1563 = vunpack.c.h.b16 %v409
    %v1564 = vunpack.c.l.b16 %v410
    %v1565 = vunpack.c.h.b16 %v410
    %v1566 = vunpack.c.l.b16 %v411
    %v1567 = vunpack.c.h.b16 %v411
    %v1568 = vunpack.c.l.b16 %v412
    %v1569 = vunpack.c.h.b16 %v412
    %v1570 = vunpack.c.l.b16 %v413
    %v1571 = vunpack.c.h.b16 %v413
    %v1572 = vunpack.c.l.b16 %v414
    %v1573 = vunpack.c.h.b16 %v414
    %v1574 = vunpack.c.l.b16 %v415
    %v1575 = vunpack.c.h.b16 %v415
    %v1576 = vunpack.c.l.b16 %v416
    %v1577 = vunpack.c.h.b16 %v416
    %v1578 = vunpack.c.l.b16 %v417
    %v1579 = vunpack.c.h.b16 %v417
    %v1580 = vunpack.c.l.b16 %v418
    %v1581 = vunpack.c.h.b16 %v418
    %v1582 = vunpack.c.l.b16 %v419
    %v1583 = vunpack.c.h.b16 %v419
    %v1584 = vunpack.c.l.b16 %v420
    %v1585 = vunpack.c.h.b16 %v420
    %v1586 = vunpack.c.l.b16 %v421
    %v1587 = vunpack.c.h.b16 %v421
    %v1588 = vunpack.c.l.b16 %v422
    %v1589 = vunpack.c.h.b16 %v422
    %v1590 = vunpack.c.l.b16 %v423
    %v1591 = vunpack.c.h.b16 %v423
    %v1592 = vunpack.c.l.b16 %v424
    %v1593 = vunpack.c.h.b16 %v424
    %v1594 = vunpack.c.l.b16 %v425
    %v1595 = vunpack.c.h.b16 %v425
    %v1596 = vunpack.c.l.b16 %v426
    %v1597 = vunpack.c.h.b16 %v426
    %v1598 = vunpack.c.l.b16 %v427
    %v1599 = vunpack.c.h.b16 %v427
    %v1600 = vunpack.c.l.b16 %v428
    %v1601 = vunpack.c.h.b16 %v428
    %v1602 = vunpack.c.l.b16 %v429
    %v1603 = vunpack.c.h.b16 %v429
    %v1604 = vunpack.c.l.b16 %v430
    %v1605 = vunpack.c.h.b16 %v430
    %v1606 = vunpack.c.l.b16 %v431
    %v1607 = vunpack.c.h.b16 %v431
    %v1608 = vunpack.c.l.b16 %v432
    %v1609 = vunpack.c.h.b16 %v432
    %v1610 = vunpack.c.l.b16 %v433
    %v1611 = vunpack.c.h.b16 %v433
    %v1612 = vunpack.c.l.b16 %v434
    %v1613 = vunpack.c.h.b16 %v434
    %v1614 = vunpack.c.l.b16 %v435
    %v1615 = vunpack.c.h.b16 %v435
    %v1616 = vunpack.c.l.b16 %v436
    %v1617 = vunpack.c.h.b16 %v436
    %v1618 = vunpack.c.l.b16 %v437
    %v1619 = vunpack.c.h.b16 %v437
    %v1620 = vunpack.c.l.b16 %v438
    %v1621 = vunpack.c.h.b16 %v438
    %v1622 = vunpack.c.l.b16 %v439
    %v1623 = vunpack.c.h.b16 %v439
    %v1624 = vunpack.c.l.b16 %v440
    %v1625 = vunpack.c.h.b16 %v440
    %v1626 = vunpack.c.l.b16 %v441
    %v1627 = vunpack.c.h.b16 %v441
    %v1628 = vunpack.c.l.b16 %v442
    %v1629 = vunpack.c.h.b16 %v442
    %v1630 = vunpack.c.l.b16 %v443
    %v1631 = vunpack.c.h.b16 %v443
    %v1632 = vunpack.c.l.b16 %v444
    %v1633 = vunpack.c.h.b16 %v444
    %v1634 = vunpack.c.l.b16 %v445
    %v1635 = vunpack.c.h.b16 %v445
    %v1636 = vunpack.c.l.b16 %v446
    %v1637 = vunpack.c.h.b16 %v446
    %v1638 = vunpack.c.l.b16 %v447
    %v1639 = vunpack.c.h.b16 %v447
    %v1640 = vunpack.c.l.b16 %v448
    %v1641 = vunpack.c.h.b16 %v448
    %v1642 = vunpack.c.l.b16 %v449
    %v1643 = vunpack.c.h.b16 %v449
    %v1644 = vpack.c.b16 %v882, %v876
    %v1645 = vpack.c.b16 %v883, %v877
    %v1646 = vpack.c.b16 %v884, %v878
    %v1647 = vpack.c.b16 %v885, %v879
    %v1648 = vpack.c.b16 %v886, %v880
    %v1649 = vpack.c.b16 %v887, %v881
    %v1650 = vpack.c.b16 %v894, %v888
    %v1651 = vpack.c.b16 %v895, %v889
    %v1652 = vpack.c.b16 %v896, %v890
    %v1653 = vpack.c.b16 %v897, %v891
    %v1654 = vpack.c.b16 %v898, %v892
    %v1655 = vpack.c.b16 %v899, %v893
    %v1656 = vpack.c.b16 %v906, %v900
    %v1657 = vpack.c.b16 %v907, %v901
    %v1658 = vpack.c.b16 %v908, %v902
    %v1659 = vpack.c.b16 %v909, %v903
    %v1660 = vpack.c.b16 %v910, %v904
    %v1661 = vpack.c.b16 %v911, %v905
    %v1662 = vpack.c.b16 %v918, %v912
    %v1663 = vpack.c.b16 %v919, %v913
    %v1664 = vpack.c.b16 %v920, %v914
    %v1665 = vpack.c.b16 %v921, %v915
    %v1666 = vpack.c.b16 %v922, %v916
    %v1667 = vpack.c.b16 %v923, %v917
    %v1668 = vpack.c.b16 %v930, %v924
    %v1669 = vpack.c.b16 %v931, %v925
    %v1670 = vpack.c.b16 %v932, %v926
    %v1671 = vpack.c.b16 %v933, %v927
    %v1672 = vpack.c.b16 %v934, %v928
    %v1673 = vpack.c.b16 %v935, %v929
    %v1674 = vpack.c.b16 %v942, %v936
    %v1675 = vpack.c.b16 %v943, %v937
    %v1676 = vpack.c.b16 %v944, %v938
    %v1677 = vpack.c.b16 %v945, %v939
    %v1678 = vpack.c.b16 %v946, %v940
    %v1679 = vpack.c.b16 %v947, %v941
    %v1680 = vpack.c.b16 %v954, %v948
    %v1681 = vpack.c.b16 %v955, %v949
    %v1682 = vpack.c.b16 %v956, %v950
    %v1683 = vpack.c.b16 %v957, %v951
    %v1684 = vpack.c.b16 %v958, %v952
    %v1685 = vpack.c.b16 %v959, %v953
    %v1686 = vpack.c.b16 %v966, %v960
    %v1687 = vpack.c.b16 %v967, %v961
    %v1688 = vpack.c.b16 %v968, %v962
    %v1689 = vpack.c.b16 %v969, %v963
    %v1690 = vpack.c.b16 %v970, %v964
    %v1691 = vpack.c.b16 %v971, %v965
    %v1692 = vpack.c.b16 %v978, %v972
    %v1693 = vpack.c.b16 %v979, %v973
    %v1694 = vpack.c.b16 %v980, %v974
    %v1695 = vpack.c.b16 %v981, %v975
    %v1696 = vpack.c.b16 %v982, %v976
    %v1697 = vpack.c.b16 %v983, %v977
    %v1698 = vpack.c.b16 %v990, %v984
    %v1699 = vpack.c.b16 %v991, %v985
    %v1700 = vpack.c.b16 %v992, %v986
    %v1701 = vpack.c.b16 %v993, %v987
    %v1702 = vpack.c.b16 %v994, %v988
    %v1703 = vpack.c.b16 %v995, %v989
    %v1704 = vpack.c.b16 %v1002, %v996
    %v1705 = vpack.c.b16 %v1003, %v997
    %v1706 = vpack.c.b16 %v1004, %v998
    %v1707 = vpack.c.b16 %v1005, %v999
    %v1708 = vpack.c.b16 %v1006, %v1000
    %v1709 = vpack.c.b16 %v1007, %v1001
    %v1710 = vpack.c.b16 %v1014, %v1008
    %v1711 = vpack.c.b16 %v1015, %v1009
    %v1712 = vpack.c.b16 %v1016, %v1010
    %v1713 = vpack.c.b16 %v1017, %v1011
    %v1714 = vpack.c.b16 %v1018, %v1012
    %v1715 = vpack.c.b16 %v1019, %v1013
    %v1716 = vpack.c.b16 %v1026, %v1020
    %v1717 = vpack.c.b16 %v1027, %v1021
    %v1718 = vpack.c.b16 %v1028, %v1022
    %v1719 = vpack.c.b16 %v1029, %v1023
    %v1720 = vpack.c.b16 %v1030, %v1024
    %v1721 = vpack.c.b16 %v1031, %v1025
    %v1722 = vpack.c.b16 %v1038, %v1032
    %v1723 = vpack.c.b16 %v1039, %v1033
    %v1724 = vpack.c.b16 %v1040, %v1034
    %v1725 = vpack.c.b16 %v1041, %v1035
    %v1726 = vpack.c.b16 %v1042, %v1036
    %v1727 = vpack.c.b16 %v1043, %v1037
    %v1728 = vpack.c.b16 %v1050, %v1044
    %v1729 = vpack.c.b16 %v1051, %v1045
    %v1730 = vpack.c.b16 %v1052, %v1046
    %v1731 = vpack.c.b16 %v1053, %v1047
    %v1732 = vpack.c.b16 %v1054, %v1048
    %v1733 = vpack.c.b16 %v1055, %v1049
    %v1734 = vpack.c.b16 %v1062, %v1056
    %v1735 = vpack.c.b16 %v1063, %v1057
    %v1736 = vpack.c.b16 %v1064, %v1058
    %v1737 = vpack.c.b16 %v1065, %v1059
    %v1738 = vpack.c.b16 %v1066, %v1060
    %v1739 = vpack.c.b16 %v1067, %v1061
    %v1740 = vpack.c.b16 %v1074, %v1068
    %v1741 = vpack.c.b16 %v1075, %v1069
    %v1742 = vpack.c.b16 %v1076, %v1070
    %v1743 = vpack.c.b16 %v1077, %v1071
    %v1744 = vpack.c.b16 %v1078, %v1072
    %v1745 = vpack.c.b16 %v1079, %v1073
    %v1746 = vpack.c.b16 %v1086, %v1080
    %v1747 = vpack.c.b16 %v1087, %v1081
    %v1748 = vpack.c.b16 %v1088, %v1082
    %v1749 = vpack.c.b16 %v1089, %v1083
    %v1750 = vpack.c.b16 %v1090, %v1084
    %v1751 = vpack.c.b16 %v1091, %v1085
    %v1752 = vpack.c.b16 %v1098, %v1092
    %v1753 = vpack.c.b16 %v1099, %v1093
    %v1754 = vpack.c.b16 %v1100, %v1094
    %v1755 = vpack.c.b16 %v1101, %v1095
    %v1756 = vpack.c.b16 %v1102, %v1096
    %v1757 = vpack.c.b16 %v1103, %v1097
    %v1758 = vpack.c.b16 %v1110, %v1104
    %v1759 = vpack.c.b16 %v1111, %v1105
    %v1760 = vpack.c.b16 %v1112, %v1106
    %v1761 = vpack.c.b16 %v1113, %v1107
    %v1762 = vpack.c.b16 %v1114, %v1108
    %v1763 = vpack.c.b16 %v1115, %v1109
    %v1764 = vpack.c.b16 %v1122, %v1116
    %v1765 = vpack.c.b16 %v1123, %v1117
    %v1766 = vpack.c.b16 %v1124, %v1118
    %v1767 = vpack.c.b16 %v1125, %v1119
    %v1768 = vpack.c.b16 %v1126, %v1120
    %v1769 = vpack.c.b16 %v1127, %v1121
    %v1770 = vpack.c.b16 %v1134, %v1128
    %v1771 = vpack.c.b16 %v1135, %v1129
    %v1772 = vpack.c.b16 %v1136, %v1130
    %v1773 = vpack.c.b16 %v1137, %v1131
    %v1774 = vpack.c.b16 %v1138, %v1132
    %v1775 = vpack.c.b16 %v1139, %v1133
    %v1776 = vpack.c.b16 %v1146, %v1140
    %v1777 = vpack.c.b16 %v1147, %v1141
    %v1778 = vpack.c.b16 %v1148, %v1142
    %v1779 = vpack.c.b16 %v1149, %v1143
    %v1780 = vpack.c.b16 %v1150, %v1144
    %v1781 = vpack.c.b16 %v1151, %v1145
    %v1782 = vpack.c.b16 %v1158, %v1152
    %v1783 = vpack.c.b16 %v1159, %v1153
    %v1784 = vpack.c.b16 %v1160, %v1154
    %v1785 = vpack.c.b16 %v1161, %v1155
    %v1786 = vpack.c.b16 %v1162, %v1156
    %v1787 = vpack.c.b16 %v1163, %v1157
    %v1788 = vpack.c.b16 %v1170, %v1164
    %v1789 = vpack.c.b16 %v1171, %v1165
    %v1790 = vpack.c.b16 %v1172, %v1166
    %v1791 = vpack.c.b16 %v1173, %v1167
    %v1792 = vpack.c.b16 %v1174, %v1168
    %v1793 = vpack.c.b16 %v1175, %v1169
    %v1794 = vpack.c.b16 %v1182, %v1176
    %v1795 = vpack.c.b16 %v1183, %v1177
    %v1796 = vpack.c.b16 %v1184, %v1178
    %v1797 = vpack.c.b16 %v1185, %v1179
    %v1798 = vpack.c.b16 %v1186, %v1180
    %v1799 = vpack.c.b16 %v1187, %v1181
    %v1800 = vpack.c.b16 %v1194, %v1188
    %v1801 = vpack.c.b16 %v1195, %v1189
    %v1802 = vpack.c.b16 %v1196, %v1190
    %v1803 = vpack.c.b16 %v1197, %v1191
    %v1804 = vpack.c.b16 %v1198, %v1192
    %v1805 = vpack.c.b16 %v1199, %v1193
    %v1806 = vpack.c.b16 %v1206, %v1200
    %v1807 = vpack.c.b16 %v1207, %v1201
    %v1808 = vpack.c.b16 %v1208, %v1202
    %v1809 = vpack.c.b16 %v1209, %v1203
    %v1810 = vpack.c.b16 %v1210, %v1204
    %v1811 = vpack.c.b16 %v1211, %v1205
    %v1812 = vpack.c.b16 %v1218, %v1212
    %v1813 = vpack.c.b16 %v1219, %v1213
    %v1814 = vpack.c.b16 %v1220, %v1214
    %v1815 = vpack.c.b16 %v1221, %v1215
    %v1816 = vpack.c.b16 %v1222, %v1216
    %v1817 = vpack.c.b16 %v1223, %v1217
    %v1818 = vpack.c.b16 %v1230, %v1224
    %v1819 = vpack.c.b16 %v1231, %v1225
    %v1820 = vpack.c.b16 %v1232, %v1226
    %v1821 = vpack.c.b16 %v1233, %v1227
    %v1822 = vpack.c.b16 %v1234, %v1228
    %v1823 = vpack.c.b16 %v1235, %v1229
    %v1824 = vpack.c.b16 %v1242, %v1236
    %v1825 = vpack.c.b16 %v1243, %v1237
    %v1826 = vpack.c.b16 %v1244, %v1238
    %v1827 = vpack.c.b16 %v1245, %v1239
    %v1828 = vpack.c.b16 %v1246, %v1240
    %v1829 = vpack.c.b16 %v1247, %v1241
    %v1830 = vpack.c.b16 %v1254, %v1248
    %v1831 = vpack.c.b16 %v1255, %v1249
    %v1832 = vpack.c.b16 %v1256, %v1250
    %v1833 = vpack.c.b16 %v1257, %v1251
    %v1834 = vpack.c.b16 %v1258, %v1252
    %v1835 = vpack.c.b16 %v1259, %v1253
    %v1836 = vpack.c.b16 %v1266, %v1260
    %v1837 = vpack.c.b16 %v1267, %v1261
    %v1838 = vpack.c.b16 %v1268, %v1262
    %v1839 = vpack.c.b16 %v1269, %v1263
    %v1840 = vpack.c.b16 %v1270, %v1264
    %v1841 = vpack.c.b16 %v1271, %v1265
    %v1842 = vpack.c.b16 %v1278, %v1272
    %v1843 = vpack.c.b16 %v1279, %v1273
    %v1844 = vpack.c.b16 %v1280, %v1274
    %v1845 = vpack.c.b16 %v1281, %v1275
    %v1846 = vpack.c.b16 %v1282, %v1276
    %v1847 = vpack.c.b16 %v1283, %v1277
    %v1848 = vpack.c.b16 %v1290, %v1284
    %v1849 = vpack.c.b16 %v1291, %v1285
    %v1850 = vpack.c.b16 %v1292, %v1286
    %v1851 = vpack.c.b16 %v1293, %v1287
    %v1852 = vpack.c.b16 %v1294, %v1288
    %v1853 = vpack.c.b16 %v1295, %v1289
    %v1854 = vpack.c.b16 %v1302, %v1296
    %v1855 = vpack.c.b16 %v1303, %v1297
    %v1856 = vpack.c.b16 %v1304, %v1298
    %v1857 = vpack.c.b16 %v1305, %v1299
    %v1858 = vpack.c.b16 %v1306, %v1300
    %v1859 = vpack.c.b16 %v1307, %v1301
    %v1860 = vpack.c.b16 %v1314, %v1308
    %v1861 = vpack.c.b16 %v1315, %v1309
    %v1862 = vpack.c.b16 %v1316, %v1310
    %v1863 = vpack.c.b16 %v1317, %v1311
    %v1864 = vpack.c.b16 %v1318, %v1312
    %v1865 = vpack.c.b16 %v1319, %v1313
    %v1866 = vpack.c.b16 %v1326, %v1320
    %v1867 = vpack.c.b16 %v1327, %v1321
    %v1868 = vpack.c.b16 %v1328, %v1322
    %v1869 = vpack.c.b16 %v1329, %v1323
    %v1870 = vpack.c.b16 %v1330, %v1324
    %v1871 = vpack.c.b16 %v1331, %v1325
    %v1872 = vpack.c.b16 %v1338, %v1332
    %v1873 = vpack.c.b16 %v1339, %v1333
    %v1874 = vpack.c.b16 %v1340, %v1334
    %v1875 = vpack.c.b16 %v1341, %v1335
    %v1876 = vpack.c.b16 %v1342, %v1336
    %v1877 = vpack.c.b16 %v1343, %v1337
    %v1878 = vpack.c.b16 %v1350, %v1344
    %v1879 = vpack.c.b16 %v1351, %v1345
    %v1880 = vpack.c.b16 %v1352, %v1346
    %v1881 = vpack.c.b16 %v1353, %v1347
    %v1882 = vpack.c.b16 %v1354, %v1348
    %v1883 = vpack.c.b16 %v1355, %v1349
    %v1884 = vpack.c.b16 %v1362, %v1356
    %v1885 = vpack.c.b16 %v1363, %v1357
    %v1886 = vpack.c.b16 %v1364, %v1358
    %v1887 = vpack.c.b16 %v1365, %v1359
    %v1888 = vpack.c.b16 %v1366, %v1360
    %v1889 = vpack.c.b16 %v1367, %v1361
    %v1890 = vpack.c.b16 %v1374, %v1368
    %v1891 = vpack.c.b16 %v1375, %v1369
    %v1892 = vpack.c.b16 %v1376, %v1370
    %v1893 = vpack.c.b16 %v1377, %v1371
    %v1894 = vpack.c.b16 %v1378, %v1372
    %v1895 = vpack.c.b16 %v1379, %v1373
    %v1896 = vpack.c.b16 %v1386, %v1380
    %v1897 = vpack.c.b16 %v1387, %v1381
    %v1898 = vpack.c.b16 %v1388, %v1382
    %v1899 = vpack.c.b16 %v1389, %v1383
    %v1900 = vpack.c.b16 %v1390, %v1384
    %v1901 = vpack.c.b16 %v1391, %v1385
    %v1902 = vpack.c.b16 %v1398, %v1392
    %v1903 = vpack.c.b16 %v1399, %v1393
    %v1904 = vpack.c.b16 %v1400, %v1394
    %v1905 = vpack.c.b16 %v1401, %v1395
    %v1906 = vpack.c.b16 %v1402, %v1396
    %v1907 = vpack.c.b16 %v1403, %v1397
    %v1908 = vpack.c.b16 %v1410, %v1404
    %v1909 = vpack.c.b16 %v1411, %v1405
    %v1910 = vpack.c.b16 %v1412, %v1406
    %v1911 = vpack.c.b16 %v1413, %v1407
    %v1912 = vpack.c.b16 %v1414, %v1408
    %v1913 = vpack.c.b16 %v1415, %v1409
    %v1914 = vpack.c.b16 %v1422, %v1416
    %v1915 = vpack.c.b16 %v1423, %v1417
    %v1916 = vpack.c.b16 %v1424, %v1418
    %v1917 = vpack.c.b16 %v1425, %v1419
    %v1918 = vpack.c.b16 %v1426, %v1420
    %v1919 = vpack.c.b16 %v1427, %v1421
    %v1920 = vpack.c.b16 %v1434, %v1428
    %v1921 = vpack.c.b16 %v1435, %v1429
    %v1922 = vpack.c.b16 %v1436, %v1430
    %v1923 = vpack.c.b16 %v1437, %v1431
    %v1924 = vpack.c.b16 %v1438, %v1432
    %v1925 = vpack.c.b16 %v1439, %v1433
    %v1926 = vpack.c.b16 %v1446, %v1440
    %v1927 = vpack.c.b16 %v1447, %v1441
    %v1928 = vpack.c.b16 %v1448, %v1442
    %v1929 = vpack.c.b16 %v1449, %v1443
    %v1930 = vpack.c.b16 %v1450, %v1444
    %v1931 = vpack.c.b16 %v1451, %v1445
    %v1932 = vpack.c.b16 %v1458, %v1452
    %v1933 = vpack.c.b16 %v1459, %v1453
    %v1934 = vpack.c.b16 %v1460, %v1454
    %v1935 = vpack.c.b16 %v1461, %v1455
    %v1936 = vpack.c.b16 %v1462, %v1456
    %v1937 = vpack.c.b16 %v1463, %v1457
    %v1938 = vpack.c.b16 %v1470, %v1464
    %v1939 = vpack.c.b16 %v1471, %v1465
    %v1940 = vpack.c.b16 %v1472, %v1466
    %v1941 = vpack.c.b16 %v1473, %v1467
    %v1942 = vpack.c.b16 %v1474, %v1468
    %v1943 = vpack.c.b16 %v1475, %v1469
    %v1944 = vpack.c.b16 %v1482, %v1476
    %v1945 = vpack.c.b16 %v1483, %v1477
    %v1946 = vpack.c.b16 %v1484, %v1478
    %v1947 = vpack.c.b16 %v1485, %v1479
    %v1948 = vpack.c.b16 %v1486, %v1480
    %v1949 = vpack.c.b16 %v1487, %v1481
    %v1950 = vpack.c.b16 %v1494, %v1488
    %v1951 = vpack.c.b16 %v1495, %v1489
    %v1952 = vpack.c.b16 %v1496, %v1490
    %v1953 = vpack.c.b16 %v1497, %v1491
    %v1954 = vpack.c.b16 %v1498, %v1492
    %v1955 = vpack.c.b16 %v1499, %v1493
    %v1956 = vpack.c.b16 %v1506, %v1500
    %v1957 = vpack.c.b16 %v1507, %v1501
    %v1958 = vpack.c.b16 %v1508, %v1502
    %v1959 = vpack.c.b16 %v1509, %v1503
    %v1960 = vpack.c.b16 %v1510, %v1504
    %v1961 = vpack.c.b16 %v1511, %v1505
    %v1962 = vpack.c.b16 %v1518, %v1512
    %v1963 = vpack.c.b16 %v1519, %v1513
    %v1964 = vpack.c.b16 %v1520, %v1514
    %v1965 = vpack.c.b16 %v1521, %v1515
    %v1966 = vpack.c.b16 %v1522, %v1516
    %v1967 = vpack.c.b16 %v1523, %v1517
    %v1968 = vpack.c.b16 %v1530, %v1524
    %v1969 = vpack.c.b16 %v1531, %v1525
    %v1970 = vpack.c.b16 %v1532, %v1526
    %v1971 = vpack.c.b16 %v1533, %v1527
    %v1972 = vpack.c.b16 %v1534, %v1528
    %v1973 = vpack.c.b16 %v1535, %v1529
    %v1974 = vpack.c.b16 %v1542, %v1536
    %v1975 = vpack.c.b16 %v1543, %v1537
    %v1976 = vpack.c.b16 %v1544, %v1538
    %v1977 = vpack.c.b16 %v1545, %v1539
    %v1978 = vpack.c.b16 %v1546, %v1540
    %v1979 = vpack.c.b16 %v1547, %v1541
    %v1980 = vpack.c.b16 %v1554, %v1548
    %v1981 = vpack.c.b16 %v1555, %v1549
    %v1982 = vpack.c.b16 %v1556, %v1550
    %v1983 = vpack.c.b16 %v1557, %v1551
    %v1984 = vpack.c.b16 %v1558, %v1552
    %v1985 = vpack.c.b16 %v1559, %v1553
    %v1986 = vpack.c.b16 %v1566, %v1560
    %v1987 = vpack.c.b16 %v1567, %v1561
    %v1988 = vpack.c.b16 %v1568, %v1562
    %v1989 = vpack.c.b16 %v1569, %v1563
    %v1990 = vpack.c.b16 %v1570, %v1564
    %v1991 = vpack.c.b16 %v1571, %v1565
    %v1992 = vpack.c.b16 %v1578, %v1572
    %v1993 = vpack.c.b16 %v1579, %v1573
    %v1994 = vpack.c.b16 %v1580, %v1574
    %v1995 = vpack.c.b16 %v1581, %v1575
    %v1996 = vpack.c.b16 %v1582, %v1576
    %v1997 = vpack.c.b16 %v1583, %v1577
    %v1998 = vpack.c.b16 %v1590, %v1584
    %v1999 = vpack.c.b16 %v1591, %v1585
    %v2000 = vpack.c.b16 %v1592, %v1586
    %v2001 = vpack.c.b16 %v1593, %v1587
    %v2002 = vpack.c.b16 %v1594, %v1588
    %v2003 = vpack.c.b16 %v1595, %v1589
    %v2004 = vpack.c.b16 %v1602, %v1596
    %v2005 = vpack.c.b16 %v1603, %v1597
    %v2006 = vpack.c.b16 %v1604, %v1598
    %v2007 = vpack.c.b16 %v1605, %v1599
    %v2008 = vpack.c.b16 %v1606, %v1600
    %v2009 = vpack.c.b16 %v1607, %v1601
    %v2010 = vpack.c.b16 %v1614, %v1608
    %v2011 = vpack.c.b16 %v1615, %v1609
    %v2012 = vpack.c.b16 %v1616, %v1610
    %v2013 = vpack.c.b16 %v1617, %v1611
    %v2014 = vpack.c.b16 %v1618, %v1612
    %v2015 = vpack.c.b16 %v1619, %v1613
    %v2016 = vpack.c.b16 %v1626, %v1620
    %v2017 = vpack.c.b16 %v1627, %v1621
    %v2018 = vpack.c.b16 %v1628, %v1622
    %v2019 = vpack.c.b16 %v1629, %v1623
    %v2020 = vpack.c.b16 %v1630, %v1624
    %v2021 = vpack.c.b16 %v1631, %v1625
    %v2022 = vpack.c.b16 %v1638, %v1632
    %v2023 = vpack.c.b16 %v1639, %v1633
    %v2024 = vpack.c.b16 %v1640, %v1634
    %v2025 = vpack.c.b16 %v1641, %v1635
    %v2026 = vpack.c.b16 %v1642, %v1636
    %v2027 = vpack.c.b16 %v1643, %v1637
    %2412 = vmatpush.bf16.msra.mxu0 %v1686
    %2413 = vmatpush.bf16.msra.mxu0 %v1680
    %2414 = vmatpush.bf16.msra.mxu0 %v1674
    %2415 = vmatpush.bf16.msra.mxu0 %v1668
    %2416 = vmatpush.bf16.msra.mxu0 %v1662
    %2417 = vmatpush.bf16.msra.mxu0 %v1656
    %2418 = vmatpush.bf16.msra.mxu0 %v1650
    %2419 = vmatpush.bf16.msra.mxu0 %v1644
    %2420 = vmatmul.bf16.gmra.mxu0 %v476
    %v2421 = vpop.f32.mrf.mxu0
    %v2422 = vadd.f32 %v452, %v2421
    %v2423 = vpop.f32.mrf.mxu0
    %2424 = vdwg.mxu0
    %2425 = vmatpush.bf16.msra.mxu0 %v1734
    %2426 = vmatpush.bf16.msra.mxu0 %v1728
    %2427 = vmatpush.bf16.msra.mxu0 %v1722
    %2428 = vmatpush.bf16.msra.mxu0 %v1716
    %2429 = vmatpush.bf16.msra.mxu0 %v1710
    %2430 = vmatpush.bf16.msra.mxu0 %v1704
    %2431 = vmatpush.bf16.msra.mxu0 %v1698
    %2432 = vmatpush.bf16.msra.mxu0 %v1692
    %2433 = vmatmul.bf16.gmra.mxu0 %v477
    %v2434 = vpop.f32.mrf.mxu0
    %v2435 = vadd.f32 %v2422, %v2434
    %v2436 = vpop.f32.mrf.mxu0
    %2437 = vdwg.mxu0
    %2438 = vmatpush.bf16.msra.mxu0 %v1782
    %2439 = vmatpush.bf16.msra.mxu0 %v1776
    %2440 = vmatpush.bf16.msra.mxu0 %v1770
    %2441 = vmatpush.bf16.msra.mxu0 %v1764
    %2442 = vmatpush.bf16.msra.mxu0 %v1758
    %2443 = vmatpush.bf16.msra.mxu0 %v1752
    %2444 = vmatpush.bf16.msra.mxu0 %v1746
    %2445 = vmatpush.bf16.msra.mxu0 %v1740
    %2446 = vmatmul.bf16.gmra.mxu0 %v478
    %v2447 = vpop.f32.mrf.mxu0
    %v2448 = vadd.f32 %v2435, %v2447
    %v2449 = vpop.f32.mrf.mxu0
    %2450 = vdwg.mxu0
    %2451 = vmatpush.bf16.msra.mxu0 %v1830
    %2452 = vmatpush.bf16.msra.mxu0 %v1824
    %2453 = vmatpush.bf16.msra.mxu0 %v1818
    %2454 = vmatpush.bf16.msra.mxu0 %v1812
    %2455 = vmatpush.bf16.msra.mxu0 %v1806
    %2456 = vmatpush.bf16.msra.mxu0 %v1800
    %2457 = vmatpush.bf16.msra.mxu0 %v1794
    %2458 = vmatpush.bf16.msra.mxu0 %v1788
    %2459 = vmatmul.bf16.gmra.mxu0 %v479
    %v2460 = vpop.f32.mrf.mxu0
    %v2461 = vadd.f32 %v2448, %v2460
    %v2462 = vpop.f32.mrf.mxu0
    %2463 = vdwg.mxu0
    %2464 = vmatpush.bf16.msra.mxu0 %v1878
    %2465 = vmatpush.bf16.msra.mxu0 %v1872
    %2466 = vmatpush.bf16.msra.mxu0 %v1866
    %2467 = vmatpush.bf16.msra.mxu0 %v1860
    %2468 = vmatpush.bf16.msra.mxu0 %v1854
    %2469 = vmatpush.bf16.msra.mxu0 %v1848
    %2470 = vmatpush.bf16.msra.mxu0 %v1842
    %2471 = vmatpush.bf16.msra.mxu0 %v1836
    %2472 = vmatmul.bf16.gmra.mxu0 %v480
    %v2473 = vpop.f32.mrf.mxu0
    %v2474 = vadd.f32 %v2461, %v2473
    %v2475 = vpop.f32.mrf.mxu0
    %2476 = vdwg.mxu0
    %2477 = vmatpush.bf16.msra.mxu0 %v1926
    %2478 = vmatpush.bf16.msra.mxu0 %v1920
    %2479 = vmatpush.bf16.msra.mxu0 %v1914
    %2480 = vmatpush.bf16.msra.mxu0 %v1908
    %2481 = vmatpush.bf16.msra.mxu0 %v1902
    %2482 = vmatpush.bf16.msra.mxu0 %v1896
    %2483 = vmatpush.bf16.msra.mxu0 %v1890
    %2484 = vmatpush.bf16.msra.mxu0 %v1884
    %2485 = vmatmul.bf16.gmra.mxu0 %v481
    %v2486 = vpop.f32.mrf.mxu0
    %v2487 = vadd.f32 %v2474, %v2486
    %v2488 = vpop.f32.mrf.mxu0
    %2489 = vdwg.mxu0
    %2490 = vmatpush.bf16.msra.mxu0 %v1974
    %2491 = vmatpush.bf16.msra.mxu0 %v1968
    %2492 = vmatpush.bf16.msra.mxu0 %v1962
    %2493 = vmatpush.bf16.msra.mxu0 %v1956
    %2494 = vmatpush.bf16.msra.mxu0 %v1950
    %2495 = vmatpush.bf16.msra.mxu0 %v1944
    %2496 = vmatpush.bf16.msra.mxu0 %v1938
    %2497 = vmatpush.bf16.msra.mxu0 %v1932
    %2498 = vmatmul.bf16.gmra.mxu0 %v482
    %v2499 = vpop.f32.mrf.mxu0
    %v2500 = vadd.f32 %v2487, %v2499
    %v2501 = vpop.f32.mrf.mxu0
    %2502 = vdwg.mxu0
    %2503 = vmatpush.bf16.msra.mxu0 %v2022
    %2504 = vmatpush.bf16.msra.mxu0 %v2016
    %2505 = vmatpush.bf16.msra.mxu0 %v2010
    %2506 = vmatpush.bf16.msra.mxu0 %v2004
    %2507 = vmatpush.bf16.msra.mxu0 %v1998
    %2508 = vmatpush.bf16.msra.mxu0 %v1992
    %2509 = vmatpush.bf16.msra.mxu0 %v1986
    %2510 = vmatpush.bf16.msra.mxu0 %v1980
    %2511 = vmatmul.bf16.gmra.mxu0 %v483
    %v2512 = vpop.f32.mrf.mxu0
    %v2513 = vadd.f32 %v2500, %v2512
    %v2514 = vpop.f32.mrf.mxu0
    %2515 = vdwg.mxu0
    %2516 = vmatpush.bf16.msra.mxu0 %v1687
    %2517 = vmatpush.bf16.msra.mxu0 %v1681
    %2518 = vmatpush.bf16.msra.mxu0 %v1675
    %2519 = vmatpush.bf16.msra.mxu0 %v1669
    %2520 = vmatpush.bf16.msra.mxu0 %v1663
    %2521 = vmatpush.bf16.msra.mxu0 %v1657
    %2522 = vmatpush.bf16.msra.mxu0 %v1651
    %2523 = vmatpush.bf16.msra.mxu0 %v1645
    %2524 = vmatmul.bf16.gmra.mxu0 %v476
    %v2525 = vpop.f32.mrf.mxu0
    %v2526 = vadd.f32 %v453, %v2525
    %v2527 = vpop.f32.mrf.mxu0
    %2528 = vdwg.mxu0
    %2529 = vmatpush.bf16.msra.mxu0 %v1735
    %2530 = vmatpush.bf16.msra.mxu0 %v1729
    %2531 = vmatpush.bf16.msra.mxu0 %v1723
    %2532 = vmatpush.bf16.msra.mxu0 %v1717
    %2533 = vmatpush.bf16.msra.mxu0 %v1711
    %2534 = vmatpush.bf16.msra.mxu0 %v1705
    %2535 = vmatpush.bf16.msra.mxu0 %v1699
    %2536 = vmatpush.bf16.msra.mxu0 %v1693
    %2537 = vmatmul.bf16.gmra.mxu0 %v477
    %v2538 = vpop.f32.mrf.mxu0
    %v2539 = vadd.f32 %v2526, %v2538
    %v2540 = vpop.f32.mrf.mxu0
    %2541 = vdwg.mxu0
    %2542 = vmatpush.bf16.msra.mxu0 %v1783
    %2543 = vmatpush.bf16.msra.mxu0 %v1777
    %2544 = vmatpush.bf16.msra.mxu0 %v1771
    %2545 = vmatpush.bf16.msra.mxu0 %v1765
    %2546 = vmatpush.bf16.msra.mxu0 %v1759
    %2547 = vmatpush.bf16.msra.mxu0 %v1753
    %2548 = vmatpush.bf16.msra.mxu0 %v1747
    %2549 = vmatpush.bf16.msra.mxu0 %v1741
    %2550 = vmatmul.bf16.gmra.mxu0 %v478
    %v2551 = vpop.f32.mrf.mxu0
    %v2552 = vadd.f32 %v2539, %v2551
    %v2553 = vpop.f32.mrf.mxu0
    %2554 = vdwg.mxu0
    %2555 = vmatpush.bf16.msra.mxu0 %v1831
    %2556 = vmatpush.bf16.msra.mxu0 %v1825
    %2557 = vmatpush.bf16.msra.mxu0 %v1819
    %2558 = vmatpush.bf16.msra.mxu0 %v1813
    %2559 = vmatpush.bf16.msra.mxu0 %v1807
    %2560 = vmatpush.bf16.msra.mxu0 %v1801
    %2561 = vmatpush.bf16.msra.mxu0 %v1795
    %2562 = vmatpush.bf16.msra.mxu0 %v1789
    %2563 = vmatmul.bf16.gmra.mxu0 %v479
    %v2564 = vpop.f32.mrf.mxu0
    %v2565 = vadd.f32 %v2552, %v2564
    %v2566 = vpop.f32.mrf.mxu0
    %2567 = vdwg.mxu0
    %2568 = vmatpush.bf16.msra.mxu0 %v1879
    %2569 = vmatpush.bf16.msra.mxu0 %v1873
    %2570 = vmatpush.bf16.msra.mxu0 %v1867
    %2571 = vmatpush.bf16.msra.mxu0 %v1861
    %2572 = vmatpush.bf16.msra.mxu0 %v1855
    %2573 = vmatpush.bf16.msra.mxu0 %v1849
    %2574 = vmatpush.bf16.msra.mxu0 %v1843
    %2575 = vmatpush.bf16.msra.mxu0 %v1837
    %2576 = vmatmul.bf16.gmra.mxu0 %v480
    %v2577 = vpop.f32.mrf.mxu0
    %v2578 = vadd.f32 %v2565, %v2577
    %v2579 = vpop.f32.mrf.mxu0
    %2580 = vdwg.mxu0
    %2581 = vmatpush.bf16.msra.mxu0 %v1927
    %2582 = vmatpush.bf16.msra.mxu0 %v1921
    %2583 = vmatpush.bf16.msra.mxu0 %v1915
    %2584 = vmatpush.bf16.msra.mxu0 %v1909
    %2585 = vmatpush.bf16.msra.mxu0 %v1903
    %2586 = vmatpush.bf16.msra.mxu0 %v1897
    %2587 = vmatpush.bf16.msra.mxu0 %v1891
    %2588 = vmatpush.bf16.msra.mxu0 %v1885
    %2589 = vmatmul.bf16.gmra.mxu0 %v481
    %v2590 = vpop.f32.mrf.mxu0
    %v2591 = vadd.f32 %v2578, %v2590
    %v2592 = vpop.f32.mrf.mxu0
    %2593 = vdwg.mxu0
    %2594 = vmatpush.bf16.msra.mxu0 %v1975
    %2595 = vmatpush.bf16.msra.mxu0 %v1969
    %2596 = vmatpush.bf16.msra.mxu0 %v1963
    %2597 = vmatpush.bf16.msra.mxu0 %v1957
    %2598 = vmatpush.bf16.msra.mxu0 %v1951
    %2599 = vmatpush.bf16.msra.mxu0 %v1945
    %2600 = vmatpush.bf16.msra.mxu0 %v1939
    %2601 = vmatpush.bf16.msra.mxu0 %v1933
    %2602 = vmatmul.bf16.gmra.mxu0 %v482
    %v2603 = vpop.f32.mrf.mxu0
    %v2604 = vadd.f32 %v2591, %v2603
    %v2605 = vpop.f32.mrf.mxu0
    %2606 = vdwg.mxu0
    %2607 = vmatpush.bf16.msra.mxu0 %v2023
    %2608 = vmatpush.bf16.msra.mxu0 %v2017
    %2609 = vmatpush.bf16.msra.mxu0 %v2011
    %2610 = vmatpush.bf16.msra.mxu0 %v2005
    %2611 = vmatpush.bf16.msra.mxu0 %v1999
    %2612 = vmatpush.bf16.msra.mxu0 %v1993
    %2613 = vmatpush.bf16.msra.mxu0 %v1987
    %2614 = vmatpush.bf16.msra.mxu0 %v1981
    %2615 = vmatmul.bf16.gmra.mxu0 %v483
    %v2616 = vpop.f32.mrf.mxu0
    %v2617 = vadd.f32 %v2604, %v2616
    %v2618 = vpop.f32.mrf.mxu0
    %2619 = vdwg.mxu0
    %2620 = vmatpush.bf16.msra.mxu0 %v1688
    %2621 = vmatpush.bf16.msra.mxu0 %v1682
    %2622 = vmatpush.bf16.msra.mxu0 %v1676
    %2623 = vmatpush.bf16.msra.mxu0 %v1670
    %2624 = vmatpush.bf16.msra.mxu0 %v1664
    %2625 = vmatpush.bf16.msra.mxu0 %v1658
    %2626 = vmatpush.bf16.msra.mxu0 %v1652
    %2627 = vmatpush.bf16.msra.mxu0 %v1646
    %2628 = vmatmul.bf16.gmra.mxu0 %v476
    %v2629 = vpop.f32.mrf.mxu0
    %v2630 = vadd.f32 %v454, %v2629
    %v2631 = vpop.f32.mrf.mxu0
    %2632 = vdwg.mxu0
    %2633 = vmatpush.bf16.msra.mxu0 %v1736
    %2634 = vmatpush.bf16.msra.mxu0 %v1730
    %2635 = vmatpush.bf16.msra.mxu0 %v1724
    %2636 = vmatpush.bf16.msra.mxu0 %v1718
    %2637 = vmatpush.bf16.msra.mxu0 %v1712
    %2638 = vmatpush.bf16.msra.mxu0 %v1706
    %2639 = vmatpush.bf16.msra.mxu0 %v1700
    %2640 = vmatpush.bf16.msra.mxu0 %v1694
    %2641 = vmatmul.bf16.gmra.mxu0 %v477
    %v2642 = vpop.f32.mrf.mxu0
    %v2643 = vadd.f32 %v2630, %v2642
    %v2644 = vpop.f32.mrf.mxu0
    %2645 = vdwg.mxu0
    %2646 = vmatpush.bf16.msra.mxu0 %v1784
    %2647 = vmatpush.bf16.msra.mxu0 %v1778
    %2648 = vmatpush.bf16.msra.mxu0 %v1772
    %2649 = vmatpush.bf16.msra.mxu0 %v1766
    %2650 = vmatpush.bf16.msra.mxu0 %v1760
    %2651 = vmatpush.bf16.msra.mxu0 %v1754
    %2652 = vmatpush.bf16.msra.mxu0 %v1748
    %2653 = vmatpush.bf16.msra.mxu0 %v1742
    %2654 = vmatmul.bf16.gmra.mxu0 %v478
    %v2655 = vpop.f32.mrf.mxu0
    %v2656 = vadd.f32 %v2643, %v2655
    %v2657 = vpop.f32.mrf.mxu0
    %2658 = vdwg.mxu0
    %2659 = vmatpush.bf16.msra.mxu0 %v1832
    %2660 = vmatpush.bf16.msra.mxu0 %v1826
    %2661 = vmatpush.bf16.msra.mxu0 %v1820
    %2662 = vmatpush.bf16.msra.mxu0 %v1814
    %2663 = vmatpush.bf16.msra.mxu0 %v1808
    %2664 = vmatpush.bf16.msra.mxu0 %v1802
    %2665 = vmatpush.bf16.msra.mxu0 %v1796
    %2666 = vmatpush.bf16.msra.mxu0 %v1790
    %2667 = vmatmul.bf16.gmra.mxu0 %v479
    %v2668 = vpop.f32.mrf.mxu0
    %v2669 = vadd.f32 %v2656, %v2668
    %v2670 = vpop.f32.mrf.mxu0
    %2671 = vdwg.mxu0
    %2672 = vmatpush.bf16.msra.mxu0 %v1880
    %2673 = vmatpush.bf16.msra.mxu0 %v1874
    %2674 = vmatpush.bf16.msra.mxu0 %v1868
    %2675 = vmatpush.bf16.msra.mxu0 %v1862
    %2676 = vmatpush.bf16.msra.mxu0 %v1856
    %2677 = vmatpush.bf16.msra.mxu0 %v1850
    %2678 = vmatpush.bf16.msra.mxu0 %v1844
    %2679 = vmatpush.bf16.msra.mxu0 %v1838
    %2680 = vmatmul.bf16.gmra.mxu0 %v480
    %v2681 = vpop.f32.mrf.mxu0
    %v2682 = vadd.f32 %v2669, %v2681
    %v2683 = vpop.f32.mrf.mxu0
    %2684 = vdwg.mxu0
    %2685 = vmatpush.bf16.msra.mxu0 %v1928
    %2686 = vmatpush.bf16.msra.mxu0 %v1922
    %2687 = vmatpush.bf16.msra.mxu0 %v1916
    %2688 = vmatpush.bf16.msra.mxu0 %v1910
    %2689 = vmatpush.bf16.msra.mxu0 %v1904
    %2690 = vmatpush.bf16.msra.mxu0 %v1898
    %2691 = vmatpush.bf16.msra.mxu0 %v1892
    %2692 = vmatpush.bf16.msra.mxu0 %v1886
    %2693 = vmatmul.bf16.gmra.mxu0 %v481
    %v2694 = vpop.f32.mrf.mxu0
    %v2695 = vadd.f32 %v2682, %v2694
    %v2696 = vpop.f32.mrf.mxu0
    %2697 = vdwg.mxu0
    %2698 = vmatpush.bf16.msra.mxu0 %v1976
    %2699 = vmatpush.bf16.msra.mxu0 %v1970
    %2700 = vmatpush.bf16.msra.mxu0 %v1964
    %2701 = vmatpush.bf16.msra.mxu0 %v1958
    %2702 = vmatpush.bf16.msra.mxu0 %v1952
    %2703 = vmatpush.bf16.msra.mxu0 %v1946
    %2704 = vmatpush.bf16.msra.mxu0 %v1940
    %2705 = vmatpush.bf16.msra.mxu0 %v1934
    %2706 = vmatmul.bf16.gmra.mxu0 %v482
    %v2707 = vpop.f32.mrf.mxu0
    %v2708 = vadd.f32 %v2695, %v2707
    %v2709 = vpop.f32.mrf.mxu0
    %2710 = vdwg.mxu0
    %2711 = vmatpush.bf16.msra.mxu0 %v2024
    %2712 = vmatpush.bf16.msra.mxu0 %v2018
    %2713 = vmatpush.bf16.msra.mxu0 %v2012
    %2714 = vmatpush.bf16.msra.mxu0 %v2006
    %2715 = vmatpush.bf16.msra.mxu0 %v2000
    %2716 = vmatpush.bf16.msra.mxu0 %v1994
    %2717 = vmatpush.bf16.msra.mxu0 %v1988
    %2718 = vmatpush.bf16.msra.mxu0 %v1982
    %2719 = vmatmul.bf16.gmra.mxu0 %v483
    %v2720 = vpop.f32.mrf.mxu0
    %v2721 = vadd.f32 %v2708, %v2720
    %v2722 = vpop.f32.mrf.mxu0
    %2723 = vdwg.mxu0
    %2724 = vmatpush.bf16.msra.mxu0 %v1689
    %2725 = vmatpush.bf16.msra.mxu0 %v1683
    %2726 = vmatpush.bf16.msra.mxu0 %v1677
    %2727 = vmatpush.bf16.msra.mxu0 %v1671
    %2728 = vmatpush.bf16.msra.mxu0 %v1665
    %2729 = vmatpush.bf16.msra.mxu0 %v1659
    %2730 = vmatpush.bf16.msra.mxu0 %v1653
    %2731 = vmatpush.bf16.msra.mxu0 %v1647
    %2732 = vmatmul.bf16.gmra.mxu0 %v476
    %v2733 = vpop.f32.mrf.mxu0
    %v2734 = vadd.f32 %v455, %v2733
    %v2735 = vpop.f32.mrf.mxu0
    %2736 = vdwg.mxu0
    %2737 = vmatpush.bf16.msra.mxu0 %v1737
    %2738 = vmatpush.bf16.msra.mxu0 %v1731
    %2739 = vmatpush.bf16.msra.mxu0 %v1725
    %2740 = vmatpush.bf16.msra.mxu0 %v1719
    %2741 = vmatpush.bf16.msra.mxu0 %v1713
    %2742 = vmatpush.bf16.msra.mxu0 %v1707
    %2743 = vmatpush.bf16.msra.mxu0 %v1701
    %2744 = vmatpush.bf16.msra.mxu0 %v1695
    %2745 = vmatmul.bf16.gmra.mxu0 %v477
    %v2746 = vpop.f32.mrf.mxu0
    %v2747 = vadd.f32 %v2734, %v2746
    %v2748 = vpop.f32.mrf.mxu0
    %2749 = vdwg.mxu0
    %2750 = vmatpush.bf16.msra.mxu0 %v1785
    %2751 = vmatpush.bf16.msra.mxu0 %v1779
    %2752 = vmatpush.bf16.msra.mxu0 %v1773
    %2753 = vmatpush.bf16.msra.mxu0 %v1767
    %2754 = vmatpush.bf16.msra.mxu0 %v1761
    %2755 = vmatpush.bf16.msra.mxu0 %v1755
    %2756 = vmatpush.bf16.msra.mxu0 %v1749
    %2757 = vmatpush.bf16.msra.mxu0 %v1743
    %2758 = vmatmul.bf16.gmra.mxu0 %v478
    %v2759 = vpop.f32.mrf.mxu0
    %v2760 = vadd.f32 %v2747, %v2759
    %v2761 = vpop.f32.mrf.mxu0
    %2762 = vdwg.mxu0
    %2763 = vmatpush.bf16.msra.mxu0 %v1833
    %2764 = vmatpush.bf16.msra.mxu0 %v1827
    %2765 = vmatpush.bf16.msra.mxu0 %v1821
    %2766 = vmatpush.bf16.msra.mxu0 %v1815
    %2767 = vmatpush.bf16.msra.mxu0 %v1809
    %2768 = vmatpush.bf16.msra.mxu0 %v1803
    %2769 = vmatpush.bf16.msra.mxu0 %v1797
    %2770 = vmatpush.bf16.msra.mxu0 %v1791
    %2771 = vmatmul.bf16.gmra.mxu0 %v479
    %v2772 = vpop.f32.mrf.mxu0
    %v2773 = vadd.f32 %v2760, %v2772
    %v2774 = vpop.f32.mrf.mxu0
    %2775 = vdwg.mxu0
    %2776 = vmatpush.bf16.msra.mxu0 %v1881
    %2777 = vmatpush.bf16.msra.mxu0 %v1875
    %2778 = vmatpush.bf16.msra.mxu0 %v1869
    %2779 = vmatpush.bf16.msra.mxu0 %v1863
    %2780 = vmatpush.bf16.msra.mxu0 %v1857
    %2781 = vmatpush.bf16.msra.mxu0 %v1851
    %2782 = vmatpush.bf16.msra.mxu0 %v1845
    %2783 = vmatpush.bf16.msra.mxu0 %v1839
    %2784 = vmatmul.bf16.gmra.mxu0 %v480
    %v2785 = vpop.f32.mrf.mxu0
    %v2786 = vadd.f32 %v2773, %v2785
    %v2787 = vpop.f32.mrf.mxu0
    %2788 = vdwg.mxu0
    %2789 = vmatpush.bf16.msra.mxu0 %v1929
    %2790 = vmatpush.bf16.msra.mxu0 %v1923
    %2791 = vmatpush.bf16.msra.mxu0 %v1917
    %2792 = vmatpush.bf16.msra.mxu0 %v1911
    %2793 = vmatpush.bf16.msra.mxu0 %v1905
    %2794 = vmatpush.bf16.msra.mxu0 %v1899
    %2795 = vmatpush.bf16.msra.mxu0 %v1893
    %2796 = vmatpush.bf16.msra.mxu0 %v1887
    %2797 = vmatmul.bf16.gmra.mxu0 %v481
    %v2798 = vpop.f32.mrf.mxu0
    %v2799 = vadd.f32 %v2786, %v2798
    %v2800 = vpop.f32.mrf.mxu0
    %2801 = vdwg.mxu0
    %2802 = vmatpush.bf16.msra.mxu0 %v1977
    %2803 = vmatpush.bf16.msra.mxu0 %v1971
    %2804 = vmatpush.bf16.msra.mxu0 %v1965
    %2805 = vmatpush.bf16.msra.mxu0 %v1959
    %2806 = vmatpush.bf16.msra.mxu0 %v1953
    %2807 = vmatpush.bf16.msra.mxu0 %v1947
    %2808 = vmatpush.bf16.msra.mxu0 %v1941
    %2809 = vmatpush.bf16.msra.mxu0 %v1935
    %2810 = vmatmul.bf16.gmra.mxu0 %v482
    %v2811 = vpop.f32.mrf.mxu0
    %v2812 = vadd.f32 %v2799, %v2811
    %v2813 = vpop.f32.mrf.mxu0
    %2814 = vdwg.mxu0
    %2815 = vmatpush.bf16.msra.mxu0 %v2025
    %2816 = vmatpush.bf16.msra.mxu0 %v2019
    %2817 = vmatpush.bf16.msra.mxu0 %v2013
    %2818 = vmatpush.bf16.msra.mxu0 %v2007
    %2819 = vmatpush.bf16.msra.mxu0 %v2001
    %2820 = vmatpush.bf16.msra.mxu0 %v1995
    %2821 = vmatpush.bf16.msra.mxu0 %v1989
    %2822 = vmatpush.bf16.msra.mxu0 %v1983
    %2823 = vmatmul.bf16.gmra.mxu0 %v483
    %v2824 = vpop.f32.mrf.mxu0
    %v2825 = vadd.f32 %v2812, %v2824
    %v2826 = vpop.f32.mrf.mxu0
    %2827 = vdwg.mxu0
    %2828 = vmatpush.bf16.msra.mxu0 %v1690
    %2829 = vmatpush.bf16.msra.mxu0 %v1684
    %2830 = vmatpush.bf16.msra.mxu0 %v1678
    %2831 = vmatpush.bf16.msra.mxu0 %v1672
    %2832 = vmatpush.bf16.msra.mxu0 %v1666
    %2833 = vmatpush.bf16.msra.mxu0 %v1660
    %2834 = vmatpush.bf16.msra.mxu0 %v1654
    %2835 = vmatpush.bf16.msra.mxu0 %v1648
    %2836 = vmatmul.bf16.gmra.mxu0 %v476
    %v2837 = vpop.f32.mrf.mxu0
    %v2838 = vadd.f32 %v456, %v2837
    %v2839 = vpop.f32.mrf.mxu0
    %2840 = vdwg.mxu0
    %2841 = vmatpush.bf16.msra.mxu0 %v1738
    %2842 = vmatpush.bf16.msra.mxu0 %v1732
    %2843 = vmatpush.bf16.msra.mxu0 %v1726
    %2844 = vmatpush.bf16.msra.mxu0 %v1720
    %2845 = vmatpush.bf16.msra.mxu0 %v1714
    %2846 = vmatpush.bf16.msra.mxu0 %v1708
    %2847 = vmatpush.bf16.msra.mxu0 %v1702
    %2848 = vmatpush.bf16.msra.mxu0 %v1696
    %2849 = vmatmul.bf16.gmra.mxu0 %v477
    %v2850 = vpop.f32.mrf.mxu0
    %v2851 = vadd.f32 %v2838, %v2850
    %v2852 = vpop.f32.mrf.mxu0
    %2853 = vdwg.mxu0
    %2854 = vmatpush.bf16.msra.mxu0 %v1786
    %2855 = vmatpush.bf16.msra.mxu0 %v1780
    %2856 = vmatpush.bf16.msra.mxu0 %v1774
    %2857 = vmatpush.bf16.msra.mxu0 %v1768
    %2858 = vmatpush.bf16.msra.mxu0 %v1762
    %2859 = vmatpush.bf16.msra.mxu0 %v1756
    %2860 = vmatpush.bf16.msra.mxu0 %v1750
    %2861 = vmatpush.bf16.msra.mxu0 %v1744
    %2862 = vmatmul.bf16.gmra.mxu0 %v478
    %v2863 = vpop.f32.mrf.mxu0
    %v2864 = vadd.f32 %v2851, %v2863
    %v2865 = vpop.f32.mrf.mxu0
    %2866 = vdwg.mxu0
    %2867 = vmatpush.bf16.msra.mxu0 %v1834
    %2868 = vmatpush.bf16.msra.mxu0 %v1828
    %2869 = vmatpush.bf16.msra.mxu0 %v1822
    %2870 = vmatpush.bf16.msra.mxu0 %v1816
    %2871 = vmatpush.bf16.msra.mxu0 %v1810
    %2872 = vmatpush.bf16.msra.mxu0 %v1804
    %2873 = vmatpush.bf16.msra.mxu0 %v1798
    %2874 = vmatpush.bf16.msra.mxu0 %v1792
    %2875 = vmatmul.bf16.gmra.mxu0 %v479
    %v2876 = vpop.f32.mrf.mxu0
    %v2877 = vadd.f32 %v2864, %v2876
    %v2878 = vpop.f32.mrf.mxu0
    %2879 = vdwg.mxu0
    %2880 = vmatpush.bf16.msra.mxu0 %v1882
    %2881 = vmatpush.bf16.msra.mxu0 %v1876
    %2882 = vmatpush.bf16.msra.mxu0 %v1870
    %2883 = vmatpush.bf16.msra.mxu0 %v1864
    %2884 = vmatpush.bf16.msra.mxu0 %v1858
    %2885 = vmatpush.bf16.msra.mxu0 %v1852
    %2886 = vmatpush.bf16.msra.mxu0 %v1846
    %2887 = vmatpush.bf16.msra.mxu0 %v1840
    %2888 = vmatmul.bf16.gmra.mxu0 %v480
    %v2889 = vpop.f32.mrf.mxu0
    %v2890 = vadd.f32 %v2877, %v2889
    %v2891 = vpop.f32.mrf.mxu0
    %2892 = vdwg.mxu0
    %2893 = vmatpush.bf16.msra.mxu0 %v1930
    %2894 = vmatpush.bf16.msra.mxu0 %v1924
    %2895 = vmatpush.bf16.msra.mxu0 %v1918
    %2896 = vmatpush.bf16.msra.mxu0 %v1912
    %2897 = vmatpush.bf16.msra.mxu0 %v1906
    %2898 = vmatpush.bf16.msra.mxu0 %v1900
    %2899 = vmatpush.bf16.msra.mxu0 %v1894
    %2900 = vmatpush.bf16.msra.mxu0 %v1888
    %2901 = vmatmul.bf16.gmra.mxu0 %v481
    %v2902 = vpop.f32.mrf.mxu0
    %v2903 = vadd.f32 %v2890, %v2902
    %v2904 = vpop.f32.mrf.mxu0
    %2905 = vdwg.mxu0
    %2906 = vmatpush.bf16.msra.mxu0 %v1978
    %2907 = vmatpush.bf16.msra.mxu0 %v1972
    %2908 = vmatpush.bf16.msra.mxu0 %v1966
    %2909 = vmatpush.bf16.msra.mxu0 %v1960
    %2910 = vmatpush.bf16.msra.mxu0 %v1954
    %2911 = vmatpush.bf16.msra.mxu0 %v1948
    %2912 = vmatpush.bf16.msra.mxu0 %v1942
    %2913 = vmatpush.bf16.msra.mxu0 %v1936
    %2914 = vmatmul.bf16.gmra.mxu0 %v482
    %v2915 = vpop.f32.mrf.mxu0
    %v2916 = vadd.f32 %v2903, %v2915
    %v2917 = vpop.f32.mrf.mxu0
    %2918 = vdwg.mxu0
    %2919 = vmatpush.bf16.msra.mxu0 %v2026
    %2920 = vmatpush.bf16.msra.mxu0 %v2020
    %2921 = vmatpush.bf16.msra.mxu0 %v2014
    %2922 = vmatpush.bf16.msra.mxu0 %v2008
    %2923 = vmatpush.bf16.msra.mxu0 %v2002
    %2924 = vmatpush.bf16.msra.mxu0 %v1996
    %2925 = vmatpush.bf16.msra.mxu0 %v1990
    %2926 = vmatpush.bf16.msra.mxu0 %v1984
    %2927 = vmatmul.bf16.gmra.mxu0 %v483
    %v2928 = vpop.f32.mrf.mxu0
    %v2929 = vadd.f32 %v2916, %v2928
    %v2930 = vpop.f32.mrf.mxu0
    %2931 = vdwg.mxu0
    %2932 = vmatpush.bf16.msra.mxu0 %v1691
    %2933 = vmatpush.bf16.msra.mxu0 %v1685
    %2934 = vmatpush.bf16.msra.mxu0 %v1679
    %2935 = vmatpush.bf16.msra.mxu0 %v1673
    %2936 = vmatpush.bf16.msra.mxu0 %v1667
    %2937 = vmatpush.bf16.msra.mxu0 %v1661
    %2938 = vmatpush.bf16.msra.mxu0 %v1655
    %2939 = vmatpush.bf16.msra.mxu0 %v1649
    %2940 = vmatmul.bf16.gmra.mxu0 %v476
    %v2941 = vpop.f32.mrf.mxu0
    %v2942 = vadd.f32 %v457, %v2941
    %v2943 = vpop.f32.mrf.mxu0
    %2944 = vdwg.mxu0
    %2945 = vmatpush.bf16.msra.mxu0 %v1739
    %2946 = vmatpush.bf16.msra.mxu0 %v1733
    %2947 = vmatpush.bf16.msra.mxu0 %v1727
    %2948 = vmatpush.bf16.msra.mxu0 %v1721
    %2949 = vmatpush.bf16.msra.mxu0 %v1715
    %2950 = vmatpush.bf16.msra.mxu0 %v1709
    %2951 = vmatpush.bf16.msra.mxu0 %v1703
    %2952 = vmatpush.bf16.msra.mxu0 %v1697
    %2953 = vmatmul.bf16.gmra.mxu0 %v477
    %v2954 = vpop.f32.mrf.mxu0
    %v2955 = vadd.f32 %v2942, %v2954
    %v2956 = vpop.f32.mrf.mxu0
    %2957 = vdwg.mxu0
    %2958 = vmatpush.bf16.msra.mxu0 %v1787
    %2959 = vmatpush.bf16.msra.mxu0 %v1781
    %2960 = vmatpush.bf16.msra.mxu0 %v1775
    %2961 = vmatpush.bf16.msra.mxu0 %v1769
    %2962 = vmatpush.bf16.msra.mxu0 %v1763
    %2963 = vmatpush.bf16.msra.mxu0 %v1757
    %2964 = vmatpush.bf16.msra.mxu0 %v1751
    %2965 = vmatpush.bf16.msra.mxu0 %v1745
    %2966 = vmatmul.bf16.gmra.mxu0 %v478
    %v2967 = vpop.f32.mrf.mxu0
    %v2968 = vadd.f32 %v2955, %v2967
    %v2969 = vpop.f32.mrf.mxu0
    %2970 = vdwg.mxu0
    %2971 = vmatpush.bf16.msra.mxu0 %v1835
    %2972 = vmatpush.bf16.msra.mxu0 %v1829
    %2973 = vmatpush.bf16.msra.mxu0 %v1823
    %2974 = vmatpush.bf16.msra.mxu0 %v1817
    %2975 = vmatpush.bf16.msra.mxu0 %v1811
    %2976 = vmatpush.bf16.msra.mxu0 %v1805
    %2977 = vmatpush.bf16.msra.mxu0 %v1799
    %2978 = vmatpush.bf16.msra.mxu0 %v1793
    %2979 = vmatmul.bf16.gmra.mxu0 %v479
    %v2980 = vpop.f32.mrf.mxu0
    %v2981 = vadd.f32 %v2968, %v2980
    %v2982 = vpop.f32.mrf.mxu0
    %2983 = vdwg.mxu0
    %2984 = vmatpush.bf16.msra.mxu0 %v1883
    %2985 = vmatpush.bf16.msra.mxu0 %v1877
    %2986 = vmatpush.bf16.msra.mxu0 %v1871
    %2987 = vmatpush.bf16.msra.mxu0 %v1865
    %2988 = vmatpush.bf16.msra.mxu0 %v1859
    %2989 = vmatpush.bf16.msra.mxu0 %v1853
    %2990 = vmatpush.bf16.msra.mxu0 %v1847
    %2991 = vmatpush.bf16.msra.mxu0 %v1841
    %2992 = vmatmul.bf16.gmra.mxu0 %v480
    %v2993 = vpop.f32.mrf.mxu0
    %v2994 = vadd.f32 %v2981, %v2993
    %v2995 = vpop.f32.mrf.mxu0
    %2996 = vdwg.mxu0
    %2997 = vmatpush.bf16.msra.mxu0 %v1931
    %2998 = vmatpush.bf16.msra.mxu0 %v1925
    %2999 = vmatpush.bf16.msra.mxu0 %v1919
    %3000 = vmatpush.bf16.msra.mxu0 %v1913
    %3001 = vmatpush.bf16.msra.mxu0 %v1907
    %3002 = vmatpush.bf16.msra.mxu0 %v1901
    %3003 = vmatpush.bf16.msra.mxu0 %v1895
    %3004 = vmatpush.bf16.msra.mxu0 %v1889
    %3005 = vmatmul.bf16.gmra.mxu0 %v481
    %v3006 = vpop.f32.mrf.mxu0
    %v3007 = vadd.f32 %v2994, %v3006
    %v3008 = vpop.f32.mrf.mxu0
    %3009 = vdwg.mxu0
    %3010 = vmatpush.bf16.msra.mxu0 %v1979
    %3011 = vmatpush.bf16.msra.mxu0 %v1973
    %3012 = vmatpush.bf16.msra.mxu0 %v1967
    %3013 = vmatpush.bf16.msra.mxu0 %v1961
    %3014 = vmatpush.bf16.msra.mxu0 %v1955
    %3015 = vmatpush.bf16.msra.mxu0 %v1949
    %3016 = vmatpush.bf16.msra.mxu0 %v1943
    %3017 = vmatpush.bf16.msra.mxu0 %v1937
    %3018 = vmatmul.bf16.gmra.mxu0 %v482
    %v3019 = vpop.f32.mrf.mxu0
    %v3020 = vadd.f32 %v3007, %v3019
    %v3021 = vpop.f32.mrf.mxu0
    %3022 = vdwg.mxu0
    %3023 = vmatpush.bf16.msra.mxu0 %v2027
    %3024 = vmatpush.bf16.msra.mxu0 %v2021
    %3025 = vmatpush.bf16.msra.mxu0 %v2015
    %3026 = vmatpush.bf16.msra.mxu0 %v2009
    %3027 = vmatpush.bf16.msra.mxu0 %v2003
    %3028 = vmatpush.bf16.msra.mxu0 %v1997
    %3029 = vmatpush.bf16.msra.mxu0 %v1991
    %3030 = vmatpush.bf16.msra.mxu0 %v1985
    %3031 = vmatmul.bf16.gmra.mxu0 %v483
    %v3032 = vpop.f32.mrf.mxu0
    %v3033 = vadd.f32 %v3020, %v3032
    %v3034 = vpop.f32.mrf.mxu0
    %3035 = vdwg.mxu0
    %v3036 = vld [vmem:[#allocation6] sm:$0xff]
    %v3037 = vld [vmem:[#allocation6 + $0x8] sm:$0xff]
    %v3038 = vld [vmem:[#allocation6 + $0x10] sm:$0xff]
    %v3039 = vld [vmem:[#allocation6 + $0x18] sm:$0xff]
    %v3040 = vld [vmem:[#allocation6 + $0x20] sm:$0xff]
    %v3041 = vld [vmem:[#allocation6 + $0x28] sm:$0xff]
    %v3042 = vld [vmem:[#allocation6 + $0x30] sm:$0xff]
    %v3043 = vld [vmem:[#allocation6 + $0x38] sm:$0xff]
    %v3044 = vld [vmem:[#allocation6 + $0x40] sm:$0xff]
    %v3045 = vld [vmem:[#allocation6 + $0x48] sm:$0xff]
    %v3046 = vld [vmem:[#allocation6 + $0x50] sm:$0xff]
    %v3047 = vld [vmem:[#allocation6 + $0x58] sm:$0xff]
    %v3048 = vld [vmem:[#allocation6 + $0x60] sm:$0xff]
    %v3049 = vld [vmem:[#allocation6 + $0x68] sm:$0xff]
    %v3050 = vld [vmem:[#allocation6 + $0x70] sm:$0xff]
    %v3051 = vld [vmem:[#allocation6 + $0x78] sm:$0xff]
    %v3052 = vld [vmem:[#allocation6 + $0x80] sm:$0xff]
    %v3053 = vld [vmem:[#allocation6 + $0x88] sm:$0xff]
    %v3054 = vld [vmem:[#allocation6 + $0x90] sm:$0xff]
    %v3055 = vld [vmem:[#allocation6 + $0x98] sm:$0xff]
    %v3056 = vld [vmem:[#allocation6 + $0xa0] sm:$0xff]
    %v3057 = vld [vmem:[#allocation6 + $0xa8] sm:$0xff]
    %v3058 = vld [vmem:[#allocation6 + $0xb0] sm:$0xff]
    %v3059 = vld [vmem:[#allocation6 + $0xb8] sm:$0xff]
    %v3060 = vld [vmem:[#allocation6 + $0xc0] sm:$0xff]
    %v3061 = vld [vmem:[#allocation6 + $0xc8] sm:$0xff]
    %v3062 = vld [vmem:[#allocation6 + $0xd0] sm:$0xff]
    %v3063 = vld [vmem:[#allocation6 + $0xd8] sm:$0xff]
    %v3064 = vld [vmem:[#allocation6 + $0xe0] sm:$0xff]
    %v3065 = vld [vmem:[#allocation6 + $0xe8] sm:$0xff]
    %v3066 = vld [vmem:[#allocation6 + $0xf0] sm:$0xff]
    %v3067 = vld [vmem:[#allocation6 + $0xf8] sm:$0xff]
    %v3068 = vxor.u32 %v2513, 2147483648
    %v3069 = vmul.f32 %v3068, 1.442695
    %v3070 = vpow.pop %v3069
    %v3071 = vadd.f32 %v3070, 1.0
    %v3072 = vrcp.pop %v3071
    %v3073 = vmul.f32 %v3071, %v3072
    %v3074 = vsub.f32 1.0, %v3073
    %v3075 = vmul.f32 %v3072, %v3074
    %v3076 = vadd.f32 %v3072, %v3075
    %vm3077 = vweird.f32 %v3071
    %vm3078 = vweird.f32 %v3072
    %vm3079 = vmor %vm3077, %vm3078
    %v3080 = vsel %vm3079, %v3072, %v3076
    %v3081 = vand.u32 2147483647, %v3071
    %vm3082 = vcmp.eq.f32.partialorder %v3081, 8.507059e+37
    %v3083 = vand.u32 %v3071, 2147483648
    %v3084 = vor.u32 1.1754944e-38, %v3083
    %v3085 = vsel %vm3082, %v3084, %v3080
    %v3086 = vmul.f32 1.0, %v3085
    %v3087 = vtanh.pop %v2617
    %v3088 = vxor.u32 %v2721, 2147483648
    %v3089 = vmul.f32 %v3088, 1.442695
    %v3090 = vpow.pop %v3089
    %v3091 = vadd.f32 %v3090, 1.0
    %v3092 = vrcp.pop %v3091
    %v3093 = vmul.f32 %v3091, %v3092
    %v3094 = vsub.f32 1.0, %v3093
    %v3095 = vmul.f32 %v3092, %v3094
    %v3096 = vadd.f32 %v3092, %v3095
    %vm3097 = vweird.f32 %v3091
    %vm3098 = vweird.f32 %v3092
    %vm3099 = vmor %vm3097, %vm3098
    %v3100 = vsel %vm3099, %v3092, %v3096
    %v3101 = vand.u32 2147483647, %v3091
    %vm3102 = vcmp.eq.f32.partialorder %v3101, 8.507059e+37
    %v3103 = vand.u32 %v3091, 2147483648
    %v3104 = vor.u32 1.1754944e-38, %v3103
    %v3105 = vsel %vm3102, %v3104, %v3100
    %v3106 = vmul.f32 1.0, %v3105
    %v3107 = vmul.f32 %v3086, %v3087
    %v3108 = vtanh.pop %v3107
    %v3109 = vmul.f32 %v3106, %v3108
    %v3110 = vxor.u32 %v2825, 2147483648
    %v3111 = vmul.f32 %v3110, 1.442695
    %v3112 = vpow.pop %v3111
    %v3113 = vadd.f32 %v3112, 1.0
    %v3114 = vrcp.pop %v3113
    %v3115 = vmul.f32 %v3113, %v3114
    %v3116 = vsub.f32 1.0, %v3115
    %v3117 = vmul.f32 %v3114, %v3116
    %v3118 = vadd.f32 %v3114, %v3117
    %vm3119 = vweird.f32 %v3113
    %vm3120 = vweird.f32 %v3114
    %vm3121 = vmor %vm3119, %vm3120
    %v3122 = vsel %vm3121, %v3114, %v3118
    %v3123 = vand.u32 2147483647, %v3113
    %vm3124 = vcmp.eq.f32.partialorder %v3123, 8.507059e+37
    %v3125 = vand.u32 %v3113, 2147483648
    %v3126 = vor.u32 1.1754944e-38, %v3125
    %v3127 = vsel %vm3124, %v3126, %v3122
    %v3128 = vmul.f32 1.0, %v3127
    %v3129 = vtanh.pop %v2929
    %v3130 = vxor.u32 %v3033, 2147483648
    %v3131 = vmul.f32 %v3130, 1.442695
    %v3132 = vpow.pop %v3131
    %v3133 = vadd.f32 %v3132, 1.0
    %v3134 = vrcp.pop %v3133
    %v3135 = vmul.f32 %v3133, %v3134
    %v3136 = vsub.f32 1.0, %v3135
    %v3137 = vmul.f32 %v3134, %v3136
    %v3138 = vadd.f32 %v3134, %v3137
    %vm3139 = vweird.f32 %v3133
    %vm3140 = vweird.f32 %v3134
    %vm3141 = vmor %vm3139, %vm3140
    %v3142 = vsel %vm3141, %v3134, %v3138
    %v3143 = vand.u32 2147483647, %v3133
    %vm3144 = vcmp.eq.f32.partialorder %v3143, 8.507059e+37
    %v3145 = vand.u32 %v3133, 2147483648
    %v3146 = vor.u32 1.1754944e-38, %v3145
    %v3147 = vsel %vm3144, %v3146, %v3142
    %v3148 = vmul.f32 1.0, %v3147
    %v3149 = vmul.f32 %v3128, %v3129
    %v3150 = vtanh.pop %v3149
    %v3151 = vmul.f32 %v3148, %v3150
    %3152 = vmatpush.msra.mxu0 %v3067
    %3153 = vmatpush.msra.mxu0 %v3066
    %3154 = vmatpush.msra.mxu0 %v3065
    %3155 = vmatpush.msra.mxu0 %v3064
    %3156 = vmatpush.msra.mxu0 %v3063
    %3157 = vmatpush.msra.mxu0 %v3062
    %3158 = vmatpush.msra.mxu0 %v3061
    %3159 = vmatpush.msra.mxu0 %v3060
    %3160 = vmatpush.msra.mxu0 %v3059
    %3161 = vmatpush.msra.mxu0 %v3058
    %3162 = vmatpush.msra.mxu0 %v3057
    %3163 = vmatpush.msra.mxu0 %v3056
    %3164 = vmatpush.msra.mxu0 %v3055
    %3165 = vmatpush.msra.mxu0 %v3054
    %3166 = vmatpush.msra.mxu0 %v3053
    %3167 = vmatpush.msra.mxu0 %v3052
    %3168 = vmatmul.f32.gmra.mxu0 %v3151
    %v3169 = vpop.f32.mrf.mxu0
    %v3170 = vadd.f32 0.0, %v3169
    %3171 = vdwg.mxu0
    %3172 = vmatpush.msra.mxu0 %v3051
    %3173 = vmatpush.msra.mxu0 %v3050
    %3174 = vmatpush.msra.mxu0 %v3049
    %3175 = vmatpush.msra.mxu0 %v3048
    %3176 = vmatpush.msra.mxu0 %v3047
    %3177 = vmatpush.msra.mxu0 %v3046
    %3178 = vmatpush.msra.mxu0 %v3045
    %3179 = vmatpush.msra.mxu0 %v3044
    %3180 = vmatpush.msra.mxu0 %v3043
    %3181 = vmatpush.msra.mxu0 %v3042
    %3182 = vmatpush.msra.mxu0 %v3041
    %3183 = vmatpush.msra.mxu0 %v3040
    %3184 = vmatpush.msra.mxu0 %v3039
    %3185 = vmatpush.msra.mxu0 %v3038
    %3186 = vmatpush.msra.mxu0 %v3037
    %3187 = vmatpush.msra.mxu0 %v3036
    %3188 = vmatmul.f32.gmra.mxu0 %v3109
    %v3189 = vpop.f32.mrf.mxu0
    %v3190 = vadd.f32 %v3170, %v3189
    %3191 = vdwg.mxu0
    %3192 = vst [vmem:[%s4] sm:$0xff] %v3190
    // Predicated region
    $region30: #{_bilstm_net_impl.1} parent=1 // pred_check
      _
    $region31: #{_bilstm_net_impl.1} parent=1 // pred_check_branch
      %3194 = sbr.rel (0) target = $region33
    $region32: #{_bilstm_net_impl.1} parent=1 // pred_region
      _
    $region33: #{_bilstm_net_impl.1} parent=1 // pred_fallthru
      _
    // Predicated region
    $region34: #{_bilstm_net_impl.1} parent=1 // pred_check
      _
    $region35: #{_bilstm_net_impl.1} parent=1 // pred_check_branch
      %3196 = sbr.rel (0) target = $region37
    $region36: #{_bilstm_net_impl.1} parent=1 // pred_region
      _
    $region37: #{_bilstm_net_impl.1} parent=1 // pred_fallthru
      _
    %3197 = vsyncpa [#allocation3], 1
    %3198 = vsyncpa [#allocation5], 1

</llo_original>
